<compile_context>
chip_gen: v7x
topology: tpu7x:2x2x1
jax: 0.10.0
libtpu: 0.0.40
codegen_flags: <defaults>
</compile_context>

<pallas_src>
from functools import partial

import jax
import jax.numpy as jnp
from jax.experimental import pallas as pl
from jax.experimental.pallas import tpu as pltpu


# ----------------------------------------------------------------------------
# Pallas kernel (whole network fused)
# ----------------------------------------------------------------------------
def _cheb_basis_t(lhat_t, z_c, K):
    """Transposed Chebyshev basis [T_0(Lhat) z, ..., T_{K-1}(Lhat) z]^T.

    z_c is [F, N] in compute dtype (features on sublanes, nodes on lanes);
    lhat_t = Lhat^T so T_{k+1}^T = 2 * T_k^T @ Lhat^T - T_{k-1}^T.  Matmul
    operands stay in lhat_t.dtype (bf16); recursion accumulates in f32.
    Returns the list of compute-dtype terms (cast once, reused everywhere).
    """
    cdt = lhat_t.dtype
    ts_c = [z_c]
    if K >= 2:
        prev_f = z_c.astype(jnp.float32)
        cur_f = jnp.dot(z_c, lhat_t, preferred_element_type=jnp.float32)
        ts_c.append(cur_f.astype(cdt))
        for _ in range(2, K):
            new_f = (2.0 * jnp.dot(ts_c[-1], lhat_t,
                                   preferred_element_type=jnp.float32)
                     - prev_f)
            prev_f, cur_f = cur_f, new_f
            ts_c.append(new_f.astype(cdt))
    return ts_c


def _stacked_project(w_ref, b_ref, pieces):
    """One MXU matmul over the stacked [sum F_i, N] basis: W_stacked @ basis + b."""
    basis = pieces[0] if len(pieces) == 1 else jnp.concatenate(pieces, axis=0)
    return jnp.dot(w_ref[...], basis, preferred_element_type=jnp.float32) + b_ref[...]


def kipfnet_resd2_kernel(lhat_t_ref, x_t_ref,
                         wc1_ref, bc1_ref, wc2_ref, bc2_ref, wm_ref, bm_ref,
                         o_t_ref, *, K, K_mix, nh1, nh2, inout_skip):
    lhat_t = lhat_t_ref[...]
    x_t = x_t_ref[...]
    cdt = lhat_t.dtype

    # Chebyshev basis of the input; reused by block 1 and (if inout_skip) conv_mix.
    n_tx = max(K, K_mix) if inout_skip else K
    tx = _cheb_basis_t(lhat_t, x_t, n_tx)

    # Block 1: relu(ChebConv_K(x) + b1) + (ChebConv_1 skip).  The skip weight is
    # folded into the stacked weight as output rows [nh1:2*nh1).
    y1 = _stacked_project(wc1_ref, bc1_ref, tx[:K])
    h1 = jnp.maximum(y1[:nh1, :], 0.0) + y1[nh1:, :]
    # TODO(synk): F.dropout(p=0.5, training=True) is stochastic; identity here (eval).

    # Block 2.
    th1 = _cheb_basis_t(lhat_t, h1.astype(cdt), K)
    y2 = _stacked_project(wc2_ref, bc2_ref, th1)
    h2 = jnp.maximum(y2[:nh2, :], 0.0) + y2[nh2:, :]

    # conv_mix on concat([h2, x]); the concat never materializes -- the bases are
    # interleaved (h2-part then x-part per Chebyshev order) to match the
    # host-side reshape of the mix weight.
    th2 = _cheb_basis_t(lhat_t, h2.astype(cdt), K_mix)
    pieces = []
    for k in range(K_mix):
        pieces.append(th2[k])
        if inout_skip:
            pieces.append(tx[k])
    ym = _stacked_project(wm_ref, bm_ref, pieces)
    o_t_ref[...] = ym.astype(o_t_ref.dtype)


# ----------------------------------------------------------------------------
# Wrapper (host-side weight stacking + single pallas_call)
# ----------------------------------------------------------------------------
def _combine_block_weights(w, b, ws, bs, compute_dtype):
    """[K,Fin,Fout] main ChebConv + [1,Fin,Fout] skip ChebConv(K=1) ->
    one stacked [2*Fout, K*Fin] weight (transposed layout) + [2*Fout, 1] bias."""
    Kk, fin, fout = w.shape
    w_main = w.reshape(Kk * fin, fout)
    w_skip = jnp.zeros((Kk * fin, fout), w.dtype).at[:fin, :].set(ws[0])
    wc = jnp.concatenate([w_main, w_skip], axis=1).T          # [2*Fout, K*Fin]
    bc = jnp.concatenate([b, bs])[:, None]                    # [2*Fout, 1]
    return wc.astype(compute_dtype), bc.astype(jnp.float32)


def kipfnet_resd2_forward(params, x, lhat, inout_skipconn=True,
                          compute_dtype=jnp.bfloat16):
    N, _ = x.shape
    K, _, nh1 = params["w1"].shape
    _, _, nh2 = params["w2"].shape
    K_mix, f_mix, n_cls = params["wm"].shape

    wc1, bc1 = _combine_block_weights(params["w1"], params["b1"],
                                      params["ws1"], params["bs1"], compute_dtype)
    wc2, bc2 = _combine_block_weights(params["w2"], params["b2"],
                                      params["ws2"], params["bs2"], compute_dtype)
    wm = params["wm"].reshape(K_mix * f_mix, n_cls).T.astype(compute_dtype)
    bm = params["bm"][:, None].astype(jnp.float32)

    # Pad the node axis to a lane multiple so every MXU output / store is a
    # full, unmasked 128-lane slab.  Padded nodes are isolated (zero Lhat
    # rows/cols, zero features) so real-node outputs are unaffected.
    n_pad = (-N) % 128
    Np = N + n_pad
    lhat_t = lhat.T.astype(compute_dtype)      # Lhat^T (handles non-symmetric A too)
    x_t = x.T.astype(compute_dtype)            # [F, N]
    if n_pad:
        lhat_t = jnp.pad(lhat_t, ((0, n_pad), (0, n_pad)))
        x_t = jnp.pad(x_t, ((0, 0), (0, n_pad)))

    kernel = partial(kipfnet_resd2_kernel, K=K, K_mix=K_mix, nh1=nh1, nh2=nh2,
                     inout_skip=inout_skipconn)
    out_t = pl.pallas_call(
        kernel,
        out_shape=jax.ShapeDtypeStruct((n_cls, Np), jnp.float32),
        in_specs=[pl.BlockSpec(memory_space=pltpu.MemorySpace.VMEM)] * 8,
        out_specs=pl.BlockSpec(memory_space=pltpu.MemorySpace.VMEM),
        compiler_params=pltpu.CompilerParams(vmem_limit_bytes=64 * 1024 * 1024),
    )(lhat_t, x_t, wc1, bc1, wc2, bc2, wm, bm)
    return out_t[:, :N].T                      # [N, num_classes]


# ----------------------------------------------------------------------------
# Graph / parameter glue (plain JAX)
# ----------------------------------------------------------------------------
def scaled_laplacian(edge_index, num_nodes):
    """PyG ChebConv default normalization:
       L = I - D^{-1/2} A D^{-1/2}; Lhat = 2L/lambda_max - I = -D^{-1/2} A D^{-1/2}."""
    row, col = edge_index[0], edge_index[1]
    A = jnp.zeros((num_nodes, num_nodes), jnp.float32).at[row, col].add(1.0)
    deg = A.sum(axis=1)
    dinv = jnp.where(deg > 0, 1.0 / jnp.sqrt(deg), 0.0)
    return -(dinv[:, None] * A * dinv[None, :])


def init_params(key, num_features, num_classes, nh1, nh2, K, K_mix,
                inout_skipconn=True):
    def glorot(k, shape):
        fan_in, fan_out = shape[-2], shape[-1]
        lim = (6.0 / (fan_in + fan_out)) ** 0.5
        return jax.random.uniform(k, shape, jnp.float32, -lim, lim)

    f_mix = nh2 + num_features if inout_skipconn else nh2
    ks = jax.random.split(key, 5)
    return dict(
        # Kipfblock1.conv1 (ChebConv K) + skip_project1 (ChebConv K=1)
        w1=glorot(ks[0], (K, num_features, nh1)),
        b1=jnp.zeros((nh1,), jnp.float32),          # PyG ChebConv: zero bias init
        ws1=glorot(ks[1], (1, num_features, nh1)),
        bs1=jnp.zeros((nh1,), jnp.float32),
        # Kipfblock2.conv1 (ChebConv K) + skip_project2 (ChebConv K=1)
        w2=glorot(ks[2], (K, nh1, nh2)),
        b2=jnp.zeros((nh2,), jnp.float32),
        ws2=glorot(ks[3], (1, nh1, nh2)),
        bs2=jnp.zeros((nh2,), jnp.float32),
        # conv_mix (ChebConv K_mix) on concat(x2, x_in)
        wm=glorot(ks[4], (K_mix, f_mix, num_classes)),
        bm=jnp.zeros((num_classes,), jnp.float32),
    )


# ----------------------------------------------------------------------------
# Example run
# ----------------------------------------------------------------------------
if __name__ == "__main__":
    N = 128                  # graph nodes (kernel lane axis)
    num_features = 16
    num_classes = 8
    nh1, nh2 = 64, 32        # module defaults
    K, K_mix = 8, 2

    # Deterministic small graph: ring + chord edges, symmetrized (no self-loops).
    edges = [(i, (i + 1) % N) for i in range(N)] + [(i, (i + 5) % N) for i in range(N)]
    edges = edges + [(j, i) for (i, j) in edges]
    edge_index = jnp.array(edges, dtype=jnp.int32).T          # [2, 512]

    key = jax.random.PRNGKey(0)
    kx, kp = jax.random.split(key)
    x = jax.random.normal(kx, (N, num_features), dtype=jnp.float32)
    params = init_params(kp, num_features, num_classes, nh1, nh2, K, K_mix)

    lhat = scaled_laplacian(edge_index, N)

    out = kipfnet_resd2_forward(params, x, lhat, inout_skipconn=True)
    out = jax.block_until_ready(out)

    assert out.shape == (N, num_classes), out.shape
    assert bool(jnp.all(jnp.isfinite(out)))
    print("KERNEL_OK")
</pallas_src>

<mosaic_0001>
module attributes {stable_mosaic.version = 11 : i64} {
  func.func @kipfnet_resd2_kernel(%arg0: memref<128x128xbf16, #tpu.memory_space<vmem>>, %arg1: memref<16x128xbf16, #tpu.memory_space<vmem>>, %arg2: memref<128x128xbf16, #tpu.memory_space<vmem>>, %arg3: memref<128x1xf32, #tpu.memory_space<vmem>>, %arg4: memref<64x512xbf16, #tpu.memory_space<vmem>>, %arg5: memref<64x1xf32, #tpu.memory_space<vmem>>, %arg6: memref<8x96xbf16, #tpu.memory_space<vmem>>, %arg7: memref<8x1xf32, #tpu.memory_space<vmem>>, %arg8: memref<8x128xf32, #tpu.memory_space<vmem>>) attributes {dimension_semantics = [], scalar_prefetch = 0 : i64, scratch_operands = 0 : i64, tpu.core_type = #tpu.core_type<tc>} {
    %c0 = arith.constant 0 : index
    %c0_0 = arith.constant 0 : index
    %0 = vector.load %arg0[%c0, %c0_0] : memref<128x128xbf16, #tpu.memory_space<vmem>>, vector<128x128xbf16>
    %c0_1 = arith.constant 0 : index
    %c0_2 = arith.constant 0 : index
    %1 = vector.load %arg1[%c0_1, %c0_2] : memref<16x128xbf16, #tpu.memory_space<vmem>>, vector<16x128xbf16>
    %2 = arith.extf %1 : vector<16x128xbf16> to vector<16x128xf32>
    %cst = arith.constant dense<0.000000e+00> : vector<16x128xf32>
    %3 = tpu.matmul %1, %0, %cst {dimension_numbers = #tpu.dot_dimension_numbers<[1], [0], [0], [1], [0, 0, 1, 1], [], []>} : vector<16x128xbf16>, vector<128x128xbf16>, vector<16x128xf32> -> vector<16x128xf32>
    %4 = arith.truncf %3 : vector<16x128xf32> to vector<16x128xbf16>
    %cst_3 = arith.constant dense<0.000000e+00> : vector<16x128xf32>
    %5 = tpu.matmul %4, %0, %cst_3 {dimension_numbers = #tpu.dot_dimension_numbers<[1], [0], [0], [1], [0, 0, 1, 1], [], []>} : vector<16x128xbf16>, vector<128x128xbf16>, vector<16x128xf32> -> vector<16x128xf32>
    %cst_4 = arith.constant 2.000000e+00 : f32
    %6 = vector.broadcast %cst_4 : f32 to vector<16x128xf32>
    %7 = arith.mulf %6, %5 : vector<16x128xf32>
    %8 = arith.subf %7, %2 : vector<16x128xf32>
    %9 = arith.truncf %8 : vector<16x128xf32> to vector<16x128xbf16>
    %cst_5 = arith.constant dense<0.000000e+00> : vector<16x128xf32>
    %10 = tpu.matmul %9, %0, %cst_5 {dimension_numbers = #tpu.dot_dimension_numbers<[1], [0], [0], [1], [0, 0, 1, 1], [], []>} : vector<16x128xbf16>, vector<128x128xbf16>, vector<16x128xf32> -> vector<16x128xf32>
    %cst_6 = arith.constant 2.000000e+00 : f32
    %11 = vector.broadcast %cst_6 : f32 to vector<16x128xf32>
    %12 = arith.mulf %11, %10 : vector<16x128xf32>
    %13 = arith.subf %12, %3 : vector<16x128xf32>
    %14 = arith.truncf %13 : vector<16x128xf32> to vector<16x128xbf16>
    %cst_7 = arith.constant dense<0.000000e+00> : vector<16x128xf32>
    %15 = tpu.matmul %14, %0, %cst_7 {dimension_numbers = #tpu.dot_dimension_numbers<[1], [0], [0], [1], [0, 0, 1, 1], [], []>} : vector<16x128xbf16>, vector<128x128xbf16>, vector<16x128xf32> -> vector<16x128xf32>
    %cst_8 = arith.constant 2.000000e+00 : f32
    %16 = vector.broadcast %cst_8 : f32 to vector<16x128xf32>
    %17 = arith.mulf %16, %15 : vector<16x128xf32>
    %18 = arith.subf %17, %8 : vector<16x128xf32>
    %19 = arith.truncf %18 : vector<16x128xf32> to vector<16x128xbf16>
    %cst_9 = arith.constant dense<0.000000e+00> : vector<16x128xf32>
    %20 = tpu.matmul %19, %0, %cst_9 {dimension_numbers = #tpu.dot_dimension_numbers<[1], [0], [0], [1], [0, 0, 1, 1], [], []>} : vector<16x128xbf16>, vector<128x128xbf16>, vector<16x128xf32> -> vector<16x128xf32>
    %cst_10 = arith.constant 2.000000e+00 : f32
    %21 = vector.broadcast %cst_10 : f32 to vector<16x128xf32>
    %22 = arith.mulf %21, %20 : vector<16x128xf32>
    %23 = arith.subf %22, %13 : vector<16x128xf32>
    %24 = arith.truncf %23 : vector<16x128xf32> to vector<16x128xbf16>
    %cst_11 = arith.constant dense<0.000000e+00> : vector<16x128xf32>
    %25 = tpu.matmul %24, %0, %cst_11 {dimension_numbers = #tpu.dot_dimension_numbers<[1], [0], [0], [1], [0, 0, 1, 1], [], []>} : vector<16x128xbf16>, vector<128x128xbf16>, vector<16x128xf32> -> vector<16x128xf32>
    %cst_12 = arith.constant 2.000000e+00 : f32
    %26 = vector.broadcast %cst_12 : f32 to vector<16x128xf32>
    %27 = arith.mulf %26, %25 : vector<16x128xf32>
    %28 = arith.subf %27, %18 : vector<16x128xf32>
    %29 = arith.truncf %28 : vector<16x128xf32> to vector<16x128xbf16>
    %cst_13 = arith.constant dense<0.000000e+00> : vector<16x128xf32>
    %30 = tpu.matmul %29, %0, %cst_13 {dimension_numbers = #tpu.dot_dimension_numbers<[1], [0], [0], [1], [0, 0, 1, 1], [], []>} : vector<16x128xbf16>, vector<128x128xbf16>, vector<16x128xf32> -> vector<16x128xf32>
    %cst_14 = arith.constant 2.000000e+00 : f32
    %31 = vector.broadcast %cst_14 : f32 to vector<16x128xf32>
    %32 = arith.mulf %31, %30 : vector<16x128xf32>
    %33 = arith.subf %32, %23 : vector<16x128xf32>
    %34 = arith.truncf %33 : vector<16x128xf32> to vector<16x128xbf16>
    %35 = tpu.concatenate %1, %4, %9, %14, %19, %24, %29, %34 in 0 : vector<16x128xbf16>, vector<16x128xbf16>, vector<16x128xbf16>, vector<16x128xbf16>, vector<16x128xbf16>, vector<16x128xbf16>, vector<16x128xbf16>, vector<16x128xbf16> -> vector<128x128xbf16>
    %c0_15 = arith.constant 0 : index
    %c0_16 = arith.constant 0 : index
    %36 = vector.load %arg2[%c0_15, %c0_16] : memref<128x128xbf16, #tpu.memory_space<vmem>>, vector<128x128xbf16>
    %cst_17 = arith.constant dense<0.000000e+00> : vector<128x128xf32>
    %37 = tpu.matmul %36, %35, %cst_17 {dimension_numbers = #tpu.dot_dimension_numbers<[1], [0], [0], [1], [0, 0, 1, 1], [], []>} : vector<128x128xbf16>, vector<128x128xbf16>, vector<128x128xf32> -> vector<128x128xf32>
    %c0_18 = arith.constant 0 : index
    %c0_19 = arith.constant 0 : index
    %38 = vector.load %arg3[%c0_18, %c0_19] : memref<128x1xf32, #tpu.memory_space<vmem>>, vector<128x1xf32>
    %39 = vector.broadcast %38 : vector<128x1xf32> to vector<128x128xf32>
    %40 = arith.addf %37, %39 : vector<128x128xf32>
    %41 = vector.extract_strided_slice %40 {offsets = [0, 0], sizes = [64, 128], strides = [1, 1]} : vector<128x128xf32> to vector<64x128xf32>
    %cst_20 = arith.constant 0.000000e+00 : f32
    %42 = vector.broadcast %cst_20 : f32 to vector<64x128xf32>
    %43 = arith.maximumf %41, %42 : vector<64x128xf32>
    %44 = vector.extract_strided_slice %40 {offsets = [64, 0], sizes = [64, 128], strides = [1, 1]} : vector<128x128xf32> to vector<64x128xf32>
    %45 = arith.addf %43, %44 : vector<64x128xf32>
    %46 = arith.truncf %45 : vector<64x128xf32> to vector<64x128xbf16>
    %47 = arith.extf %46 : vector<64x128xbf16> to vector<64x128xf32>
    %cst_21 = arith.constant dense<0.000000e+00> : vector<64x128xf32>
    %48 = tpu.matmul %46, %0, %cst_21 {dimension_numbers = #tpu.dot_dimension_numbers<[1], [0], [0], [1], [0, 0, 1, 1], [], []>} : vector<64x128xbf16>, vector<128x128xbf16>, vector<64x128xf32> -> vector<64x128xf32>
    %49 = arith.truncf %48 : vector<64x128xf32> to vector<64x128xbf16>
    %cst_22 = arith.constant dense<0.000000e+00> : vector<64x128xf32>
    %50 = tpu.matmul %49, %0, %cst_22 {dimension_numbers = #tpu.dot_dimension_numbers<[1], [0], [0], [1], [0, 0, 1, 1], [], []>} : vector<64x128xbf16>, vector<128x128xbf16>, vector<64x128xf32> -> vector<64x128xf32>
    %cst_23 = arith.constant 2.000000e+00 : f32
    %51 = vector.broadcast %cst_23 : f32 to vector<64x128xf32>
    %52 = arith.mulf %51, %50 : vector<64x128xf32>
    %53 = arith.subf %52, %47 : vector<64x128xf32>
    %54 = arith.truncf %53 : vector<64x128xf32> to vector<64x128xbf16>
    %cst_24 = arith.constant dense<0.000000e+00> : vector<64x128xf32>
    %55 = tpu.matmul %54, %0, %cst_24 {dimension_numbers = #tpu.dot_dimension_numbers<[1], [0], [0], [1], [0, 0, 1, 1], [], []>} : vector<64x128xbf16>, vector<128x128xbf16>, vector<64x128xf32> -> vector<64x128xf32>
    %cst_25 = arith.constant 2.000000e+00 : f32
    %56 = vector.broadcast %cst_25 : f32 to vector<64x128xf32>
    %57 = arith.mulf %56, %55 : vector<64x128xf32>
    %58 = arith.subf %57, %48 : vector<64x128xf32>
    %59 = arith.truncf %58 : vector<64x128xf32> to vector<64x128xbf16>
    %cst_26 = arith.constant dense<0.000000e+00> : vector<64x128xf32>
    %60 = tpu.matmul %59, %0, %cst_26 {dimension_numbers = #tpu.dot_dimension_numbers<[1], [0], [0], [1], [0, 0, 1, 1], [], []>} : vector<64x128xbf16>, vector<128x128xbf16>, vector<64x128xf32> -> vector<64x128xf32>
    %cst_27 = arith.constant 2.000000e+00 : f32
    %61 = vector.broadcast %cst_27 : f32 to vector<64x128xf32>
    %62 = arith.mulf %61, %60 : vector<64x128xf32>
    %63 = arith.subf %62, %53 : vector<64x128xf32>
    %64 = arith.truncf %63 : vector<64x128xf32> to vector<64x128xbf16>
    %cst_28 = arith.constant dense<0.000000e+00> : vector<64x128xf32>
    %65 = tpu.matmul %64, %0, %cst_28 {dimension_numbers = #tpu.dot_dimension_numbers<[1], [0], [0], [1], [0, 0, 1, 1], [], []>} : vector<64x128xbf16>, vector<128x128xbf16>, vector<64x128xf32> -> vector<64x128xf32>
    %cst_29 = arith.constant 2.000000e+00 : f32
    %66 = vector.broadcast %cst_29 : f32 to vector<64x128xf32>
    %67 = arith.mulf %66, %65 : vector<64x128xf32>
    %68 = arith.subf %67, %58 : vector<64x128xf32>
    %69 = arith.truncf %68 : vector<64x128xf32> to vector<64x128xbf16>
    %cst_30 = arith.constant dense<0.000000e+00> : vector<64x128xf32>
    %70 = tpu.matmul %69, %0, %cst_30 {dimension_numbers = #tpu.dot_dimension_numbers<[1], [0], [0], [1], [0, 0, 1, 1], [], []>} : vector<64x128xbf16>, vector<128x128xbf16>, vector<64x128xf32> -> vector<64x128xf32>
    %cst_31 = arith.constant 2.000000e+00 : f32
    %71 = vector.broadcast %cst_31 : f32 to vector<64x128xf32>
    %72 = arith.mulf %71, %70 : vector<64x128xf32>
    %73 = arith.subf %72, %63 : vector<64x128xf32>
    %74 = arith.truncf %73 : vector<64x128xf32> to vector<64x128xbf16>
    %cst_32 = arith.constant dense<0.000000e+00> : vector<64x128xf32>
    %75 = tpu.matmul %74, %0, %cst_32 {dimension_numbers = #tpu.dot_dimension_numbers<[1], [0], [0], [1], [0, 0, 1, 1], [], []>} : vector<64x128xbf16>, vector<128x128xbf16>, vector<64x128xf32> -> vector<64x128xf32>
    %cst_33 = arith.constant 2.000000e+00 : f32
    %76 = vector.broadcast %cst_33 : f32 to vector<64x128xf32>
    %77 = arith.mulf %76, %75 : vector<64x128xf32>
    %78 = arith.subf %77, %68 : vector<64x128xf32>
    %79 = arith.truncf %78 : vector<64x128xf32> to vector<64x128xbf16>
    %80 = tpu.concatenate %46, %49, %54, %59, %64, %69, %74, %79 in 0 : vector<64x128xbf16>, vector<64x128xbf16>, vector<64x128xbf16>, vector<64x128xbf16>, vector<64x128xbf16>, vector<64x128xbf16>, vector<64x128xbf16>, vector<64x128xbf16> -> vector<512x128xbf16>
    %c0_34 = arith.constant 0 : index
    %c0_35 = arith.constant 0 : index
    %81 = vector.load %arg4[%c0_34, %c0_35] : memref<64x512xbf16, #tpu.memory_space<vmem>>, vector<64x512xbf16>
    %cst_36 = arith.constant dense<0.000000e+00> : vector<64x128xf32>
    %82 = tpu.matmul %81, %80, %cst_36 {dimension_numbers = #tpu.dot_dimension_numbers<[1], [0], [0], [1], [0, 0, 1, 1], [], []>} : vector<64x512xbf16>, vector<512x128xbf16>, vector<64x128xf32> -> vector<64x128xf32>
    %c0_37 = arith.constant 0 : index
    %c0_38 = arith.constant 0 : index
    %83 = vector.load %arg5[%c0_37, %c0_38] : memref<64x1xf32, #tpu.memory_space<vmem>>, vector<64x1xf32>
    %84 = vector.broadcast %83 : vector<64x1xf32> to vector<64x128xf32>
    %85 = arith.addf %82, %84 : vector<64x128xf32>
    %86 = vector.extract_strided_slice %85 {offsets = [0, 0], sizes = [32, 128], strides = [1, 1]} : vector<64x128xf32> to vector<32x128xf32>
    %cst_39 = arith.constant 0.000000e+00 : f32
    %87 = vector.broadcast %cst_39 : f32 to vector<32x128xf32>
    %88 = arith.maximumf %86, %87 : vector<32x128xf32>
    %89 = vector.extract_strided_slice %85 {offsets = [32, 0], sizes = [32, 128], strides = [1, 1]} : vector<64x128xf32> to vector<32x128xf32>
    %90 = arith.addf %88, %89 : vector<32x128xf32>
    %91 = arith.truncf %90 : vector<32x128xf32> to vector<32x128xbf16>
    %cst_40 = arith.constant dense<0.000000e+00> : vector<32x128xf32>
    %92 = tpu.matmul %91, %0, %cst_40 {dimension_numbers = #tpu.dot_dimension_numbers<[1], [0], [0], [1], [0, 0, 1, 1], [], []>} : vector<32x128xbf16>, vector<128x128xbf16>, vector<32x128xf32> -> vector<32x128xf32>
    %93 = arith.truncf %92 : vector<32x128xf32> to vector<32x128xbf16>
    %94 = tpu.concatenate %91, %1, %93, %4 in 0 : vector<32x128xbf16>, vector<16x128xbf16>, vector<32x128xbf16>, vector<16x128xbf16> -> vector<96x128xbf16>
    %c0_41 = arith.constant 0 : index
    %c0_42 = arith.constant 0 : index
    %95 = vector.load %arg6[%c0_41, %c0_42] : memref<8x96xbf16, #tpu.memory_space<vmem>>, vector<8x96xbf16>
    %cst_43 = arith.constant dense<0.000000e+00> : vector<8x128xf32>
    %96 = tpu.matmul %95, %94, %cst_43 {dimension_numbers = #tpu.dot_dimension_numbers<[1], [0], [0], [1], [0, 0, 1, 1], [], []>} : vector<8x96xbf16>, vector<96x128xbf16>, vector<8x128xf32> -> vector<8x128xf32>
    %c0_44 = arith.constant 0 : index
    %c0_45 = arith.constant 0 : index
    %97 = vector.load %arg7[%c0_44, %c0_45] : memref<8x1xf32, #tpu.memory_space<vmem>>, vector<8x1xf32>
    %98 = vector.broadcast %97 : vector<8x1xf32> to vector<8x128xf32>
    %99 = arith.addf %96, %98 : vector<8x128xf32>
    %c0_46 = arith.constant 0 : index
    %c0_47 = arith.constant 0 : index
    %100 = vector.load %arg8[%c0_46, %c0_47] : memref<8x128xf32, #tpu.memory_space<vmem>>, vector<8x128xf32>
    tpu.vector_store %arg8[%c0_46, %c0_47], %99 {strides = array<i32>} : memref<8x128xf32, #tpu.memory_space<vmem>>, vector<8x128xf32>,
    return
  }
}

</mosaic_0001>

<llo_original>
// kernel: tpu_custom_call.1
$region0: #{tpu_custom_call.1}
  #allocation0 [shape = 'u32[]', space=smem, size = 0x4, offset = 0x4, fixed_abs, tag = 'smem constant byte address 0x4 - core index']
  #allocation1 [shape = 'u32[144,128]{1,0:T(1,128)}', space=vmem, size = 0x12000, scoped, tag = 'internal scratch']
  %s0 = inlined_call_operand.hbm [shape: bf16[128,128], index: 0, kind: input, shape index: {}]
  %s1 = inlined_call_operand.hbm [shape: bf16[16,128], index: 1, kind: input, shape index: {}]
  %s2 = inlined_call_operand.hbm [shape: bf16[128,128], index: 2, kind: input, shape index: {}]
  %s3 = inlined_call_operand.hbm [shape: f32[128,1], index: 3, kind: input, shape index: {}]
  %s4 = inlined_call_operand.hbm [shape: bf16[64,512], index: 4, kind: input, shape index: {}]
  %s5 = inlined_call_operand.hbm [shape: f32[64,1], index: 5, kind: input, shape index: {}]
  %s6 = inlined_call_operand.hbm [shape: bf16[8,96], index: 6, kind: input, shape index: {}]
  %s7 = inlined_call_operand.hbm [shape: f32[8,1], index: 7, kind: input, shape index: {}]
  %s8 = inlined_call_operand.hbm [shape: f32[8,128], index: 8, kind: output, shape index: {}]
  %s9 = sld [smem:[#allocation0]]
  $region74: #{tpu_custom_call.1} parent=0
    _
  %s11 = ssub.s32 1, %s9
  %s12 = scalar_select 0, %s11, %s9
  $region1: #{tpu_custom_call.1} parent=0
    #allocation2 [shape = 'u8[32768]{0}', space=vmem, size = 0x8000, scoped, tag = 'input window, operand 0, single buffered']
    #allocation3 [shape = 's32[1]{0}', space=sflag, size = 0x4, scoped, tag = 'scoped memory for tpu_custom_call.1']
    #allocation4 [shape = 's32[1]{0}', space=sflag, size = 0x4, scoped, tag = 'scoped memory for tpu_custom_call.1']
    #allocation5 [shape = 'u8[4096]{0}', space=vmem, size = 0x1000, scoped, tag = 'input window, operand 1, single buffered']
    #allocation6 [shape = 's32[1]{0}', space=sflag, size = 0x4, scoped, tag = 'scoped memory for tpu_custom_call.1']
    #allocation7 [shape = 'u8[32768]{0}', space=vmem, size = 0x8000, scoped, tag = 'input window, operand 2, single buffered']
    #allocation8 [shape = 'u8[65536]{0}', space=vmem, size = 0x10000, scoped, tag = 'input window, operand 3, single buffered']
    #allocation9 [shape = 's32[1]{0}', space=sflag, size = 0x4, scoped, tag = 'scoped memory for tpu_custom_call.1']
    #allocation10 [shape = 'u8[65536]{0}', space=vmem, size = 0x10000, scoped, tag = 'input window, operand 4, single buffered']
    #allocation11 [shape = 'u8[32768]{0}', space=vmem, size = 0x8000, scoped, tag = 'input window, operand 5, single buffered']
    #allocation12 [shape = 's32[1]{0}', space=sflag, size = 0x4, scoped, tag = 'scoped memory for tpu_custom_call.1']
    #allocation13 [shape = 'u8[2048]{0}', space=vmem, size = 0x800, scoped, tag = 'input window, operand 6, single buffered']
    #allocation14 [shape = 'u8[4096]{0}', space=vmem, size = 0x1000, scoped, tag = 'input window, operand 7, single buffered']
    #allocation15 [shape = 's32[1]{0}', space=sflag, size = 0x4, scoped, tag = 'scoped memory for tpu_custom_call.1']
    #allocation16 [shape = 'u8[4096]{0}', space=vmem, size = 0x1000, scoped, tag = 'output window, operand 0, single buffered']
    %13 = vsyncpa [#allocation3], 0
    %14 = vsyncpa [#allocation6], 0
    %15 = vsyncpa [#allocation9], 0
    %16 = vsyncpa [#allocation12], 0
    %17 = vsyncpa [#allocation15], 0
    %18 = vsyncpa [#allocation4], 0
    // Predicated region
    $region2: #{tpu_custom_call.1} parent=1 // pred_check
      _
    $region3: #{tpu_custom_call.1} parent=1 // pred_check_branch
      %20 = sbr.rel (0) target = $region5
    $region4: #{tpu_custom_call.1} parent=1 // pred_region
      %s22 = ssub.s32 1024, 1024
      %23 = vsyncadd [#allocation3], %s22
      %s24 = sshll.u32 [#allocation2], 4
      %s25 = int_to_ptr.vmem [resolvable:$true] %s24
      %30 = dma.hbm_to_vmem [thread:$0]  %s0, 1024, %s25, [#allocation3], 64, 64, 4
    $region5: #{tpu_custom_call.1} parent=1 // pred_fallthru
      _
    // Predicated region
    $region6: #{tpu_custom_call.1} parent=1 // pred_check
      _
    $region7: #{tpu_custom_call.1} parent=1 // pred_check_branch
      %32 = sbr.rel (0) target = $region9
    $region8: #{tpu_custom_call.1} parent=1 // pred_region
      %s34 = ssub.s32 128, 128
      %35 = vsyncadd [#allocation6], %s34
      %s36 = sshll.u32 [#allocation5], 4
      %s37 = int_to_ptr.vmem [resolvable:$true] %s36
      %42 = dma.hbm_to_vmem [thread:$0]  %s1, 128, %s37, [#allocation6], 64, 64, 4
    $region9: #{tpu_custom_call.1} parent=1 // pred_fallthru
      _
    // Predicated region
    $region10: #{tpu_custom_call.1} parent=1 // pred_check
      _
    $region11: #{tpu_custom_call.1} parent=1 // pred_check_branch
      %44 = sbr.rel (0) target = $region13
    $region12: #{tpu_custom_call.1} parent=1 // pred_region
      %s46 = ssub.s32 1024, 1024
      %47 = vsyncadd [#allocation6], %s46
      %s48 = sshll.u32 [#allocation7], 4
      %s49 = int_to_ptr.vmem [resolvable:$true] %s48
      %54 = dma.hbm_to_vmem [thread:$0]  %s2, 1024, %s49, [#allocation6], 64, 64, 4
    $region13: #{tpu_custom_call.1} parent=1 // pred_fallthru
      _
    // Predicated region
    $region14: #{tpu_custom_call.1} parent=1 // pred_check
      _
    $region15: #{tpu_custom_call.1} parent=1 // pred_check_branch
      %56 = sbr.rel (0) target = $region17
    $region16: #{tpu_custom_call.1} parent=1 // pred_region
      %s58 = ssub.s32 2048, 2048
      %59 = vsyncadd [#allocation9], %s58
      %s60 = sshll.u32 [#allocation8], 4
      %s61 = int_to_ptr.vmem [resolvable:$true] %s60
      %66 = dma.hbm_to_vmem [thread:$0]  %s3, 2048, %s61, [#allocation9], 128, 128, 8
    $region17: #{tpu_custom_call.1} parent=1 // pred_fallthru
      _
    // Predicated region
    $region18: #{tpu_custom_call.1} parent=1 // pred_check
      _
    $region19: #{tpu_custom_call.1} parent=1 // pred_check_branch
      %68 = sbr.rel (0) target = $region21
    $region20: #{tpu_custom_call.1} parent=1 // pred_region
      %s70 = ssub.s32 2048, 2048
      %71 = vsyncadd [#allocation9], %s70
      %s72 = sshll.u32 [#allocation10], 4
      %s73 = int_to_ptr.vmem [resolvable:$true] %s72
      %78 = dma.hbm_to_vmem [thread:$0]  %s4, 2048, %s73, [#allocation9], 256, 256, 16
    $region21: #{tpu_custom_call.1} parent=1 // pred_fallthru
      _
    // Predicated region
    $region22: #{tpu_custom_call.1} parent=1 // pred_check
      _
    $region23: #{tpu_custom_call.1} parent=1 // pred_check_branch
      %80 = sbr.rel (0) target = $region25
    $region24: #{tpu_custom_call.1} parent=1 // pred_region
      %s82 = ssub.s32 1024, 1024
      %83 = vsyncadd [#allocation12], %s82
      %s84 = sshll.u32 [#allocation11], 4
      %s85 = int_to_ptr.vmem [resolvable:$true] %s84
      %90 = dma.hbm_to_vmem [thread:$0]  %s5, 1024, %s85, [#allocation12], 128, 128, 8
    $region25: #{tpu_custom_call.1} parent=1 // pred_fallthru
      _
    // Predicated region
    $region26: #{tpu_custom_call.1} parent=1 // pred_check
      _
    $region27: #{tpu_custom_call.1} parent=1 // pred_check_branch
      %92 = sbr.rel (0) target = $region29
    $region28: #{tpu_custom_call.1} parent=1 // pred_region
      %s94 = ssub.s32 64, 64
      %95 = vsyncadd [#allocation12], %s94
      %s97 = sshll.u32 [#allocation13], 4
      %s98 = int_to_ptr.vmem [resolvable:$true] %s97
      %100 = dma.hbm_to_vmem [thread:$0]  %s6, 64, %s98, [#allocation12]
    $region29: #{tpu_custom_call.1} parent=1 // pred_fallthru
      _
    // Predicated region
    $region30: #{tpu_custom_call.1} parent=1 // pred_check
      _
    $region31: #{tpu_custom_call.1} parent=1 // pred_check_branch
      %102 = sbr.rel (0) target = $region33
    $region32: #{tpu_custom_call.1} parent=1 // pred_region
      %s104 = ssub.s32 128, 128
      %105 = vsyncadd [#allocation15], %s104
      %s107 = sshll.u32 [#allocation14], 4
      %s108 = int_to_ptr.vmem [resolvable:$true] %s107
      %110 = dma.hbm_to_vmem [thread:$0]  %s7, 128, %s108, [#allocation15]
    $region33: #{tpu_custom_call.1} parent=1 // pred_fallthru
      _
    // Predicated region
    $region34: #{tpu_custom_call.1} parent=1 // pred_check
      _
    $region35: #{tpu_custom_call.1} parent=1 // pred_check_branch
      %112 = sbr.rel (0) target = $region37
    $region36: #{tpu_custom_call.1} parent=1 // pred_region
      %113 = dma.done [#allocation3], 1024
    $region37: #{tpu_custom_call.1} parent=1 // pred_fallthru
      _
    // Predicated region
    $region38: #{tpu_custom_call.1} parent=1 // pred_check
      _
    $region39: #{tpu_custom_call.1} parent=1 // pred_check_branch
      %115 = sbr.rel (0) target = $region41
    $region40: #{tpu_custom_call.1} parent=1 // pred_region
      %116 = dma.done [#allocation6], 128
    $region41: #{tpu_custom_call.1} parent=1 // pred_fallthru
      _
    // Predicated region
    $region42: #{tpu_custom_call.1} parent=1 // pred_check
      _
    $region43: #{tpu_custom_call.1} parent=1 // pred_check_branch
      %118 = sbr.rel (0) target = $region45
    $region44: #{tpu_custom_call.1} parent=1 // pred_region
      %119 = dma.done [#allocation6], 1024
    $region45: #{tpu_custom_call.1} parent=1 // pred_fallthru
      _
    // Predicated region
    $region46: #{tpu_custom_call.1} parent=1 // pred_check
      _
    $region47: #{tpu_custom_call.1} parent=1 // pred_check_branch
      %121 = sbr.rel (0) target = $region49
    $region48: #{tpu_custom_call.1} parent=1 // pred_region
      %122 = dma.done [#allocation9], 2048
    $region49: #{tpu_custom_call.1} parent=1 // pred_fallthru
      _
    // Predicated region
    $region50: #{tpu_custom_call.1} parent=1 // pred_check
      _
    $region51: #{tpu_custom_call.1} parent=1 // pred_check_branch
      %124 = sbr.rel (0) target = $region53
    $region52: #{tpu_custom_call.1} parent=1 // pred_region
      %125 = dma.done [#allocation9], 2048
    $region53: #{tpu_custom_call.1} parent=1 // pred_fallthru
      _
    // Predicated region
    $region54: #{tpu_custom_call.1} parent=1 // pred_check
      _
    $region55: #{tpu_custom_call.1} parent=1 // pred_check_branch
      %127 = sbr.rel (0) target = $region57
    $region56: #{tpu_custom_call.1} parent=1 // pred_region
      %128 = dma.done [#allocation12], 1024
    $region57: #{tpu_custom_call.1} parent=1 // pred_fallthru
      _
    // Predicated region
    $region58: #{tpu_custom_call.1} parent=1 // pred_check
      _
    $region59: #{tpu_custom_call.1} parent=1 // pred_check_branch
      %130 = sbr.rel (0) target = $region61
    $region60: #{tpu_custom_call.1} parent=1 // pred_region
      %131 = dma.done [#allocation12], 64
    $region61: #{tpu_custom_call.1} parent=1 // pred_fallthru
      _
    // Predicated region
    $region62: #{tpu_custom_call.1} parent=1 // pred_check
      _
    $region63: #{tpu_custom_call.1} parent=1 // pred_check_branch
      %133 = sbr.rel (0) target = $region65
    $region64: #{tpu_custom_call.1} parent=1 // pred_region
      %134 = dma.done [#allocation15], 128
    $region65: #{tpu_custom_call.1} parent=1 // pred_fallthru
      _
    %v136 = vld [vmem:[#allocation2] sm:$0xf]
    %v137 = vld [vmem:[#allocation2 + $0x4] sm:$0xf]
    %v138 = vld [vmem:[#allocation2 + $0x8] sm:$0xf]
    %v139 = vld [vmem:[#allocation2 + $0xc] sm:$0xf]
    %v140 = vld [vmem:[#allocation2 + $0x10] sm:$0xf]
    %v141 = vld [vmem:[#allocation2 + $0x14] sm:$0xf]
    %v142 = vld [vmem:[#allocation2 + $0x18] sm:$0xf]
    %v143 = vld [vmem:[#allocation2 + $0x1c] sm:$0xf]
    %v144 = vld [vmem:[#allocation2 + $0x20] sm:$0xf]
    %v145 = vld [vmem:[#allocation2 + $0x24] sm:$0xf]
    %v146 = vld [vmem:[#allocation2 + $0x28] sm:$0xf]
    %v147 = vld [vmem:[#allocation2 + $0x2c] sm:$0xf]
    %v148 = vld [vmem:[#allocation2 + $0x30] sm:$0xf]
    %v149 = vld [vmem:[#allocation2 + $0x34] sm:$0xf]
    %v150 = vld [vmem:[#allocation2 + $0x38] sm:$0xf]
    %v151 = vld [vmem:[#allocation2 + $0x3c] sm:$0xf]
    %v152 = vld [vmem:[#allocation5] sm:$0xf]
    %v153 = vld [vmem:[#allocation5 + $0x4] sm:$0xf]
    %v154 = vunpack.c.l.bf16 %v152
    %v155 = vunpack.c.l.bf16 %v153
    %v158 = vunpack.c.l.b16 %v152
    %v159 = vunpack.c.l.b16 %v153
    %v160 = vpack.c.b16 %v159, %v158
    %v178 = vunpack.c.l.b16 %v136
    %v179 = vunpack.c.l.b16 %v137
    %v180 = vunpack.c.l.b16 %v138
    %v181 = vunpack.c.l.b16 %v139
    %v182 = vunpack.c.l.b16 %v140
    %v183 = vunpack.c.l.b16 %v141
    %v184 = vunpack.c.l.b16 %v142
    %v185 = vunpack.c.l.b16 %v143
    %v186 = vunpack.c.l.b16 %v144
    %v187 = vunpack.c.l.b16 %v145
    %v188 = vunpack.c.l.b16 %v146
    %v189 = vunpack.c.l.b16 %v147
    %v190 = vunpack.c.l.b16 %v148
    %v191 = vunpack.c.l.b16 %v149
    %v192 = vunpack.c.l.b16 %v150
    %v193 = vunpack.c.l.b16 %v151
    %v194 = vpack.c.b16 %v179, %v178
    %v195 = vpack.c.b16 %v181, %v180
    %v196 = vpack.c.b16 %v183, %v182
    %v197 = vpack.c.b16 %v185, %v184
    %v198 = vpack.c.b16 %v187, %v186
    %v199 = vpack.c.b16 %v189, %v188
    %v200 = vpack.c.b16 %v191, %v190
    %v201 = vpack.c.b16 %v193, %v192
    %210 = vmatprep.subr.bf16.mxu0 0
    %211 = vmatpush1.bf16.msra.mxu0 %v194
    %212 = vmatprep.subr.bf16.mxu0 0
    %213 = vmatpush1.bf16.msra.mxu0 %v195
    %214 = vmatprep.subr.bf16.mxu0 0
    %215 = vmatpush1.bf16.msra.mxu0 %v196
    %216 = vmatprep.subr.bf16.mxu0 0
    %217 = vmatpush1.bf16.msra.mxu0 %v197
    %218 = vmatprep.subr.bf16.mxu0 0
    %219 = vmatpush1.bf16.msra.mxu0 %v198
    %220 = vmatprep.subr.bf16.mxu0 0
    %221 = vmatpush1.bf16.msra.mxu0 %v199
    %222 = vmatprep.subr.bf16.mxu0 0
    %223 = vmatpush1.bf16.msra.mxu0 %v200
    %224 = vmatprep.subr.bf16.mxu0 0
    %225 = vmatpush1.bf16.msra.mxu0 %v201
    %226 = vmatprep.subr.bf16.mxu0 0
    %227 = vmatpush1.bf16.msra.mxu0 0
    %228 = vmatprep.subr.bf16.mxu0 0
    %229 = vmatpush1.bf16.msra.mxu0 0
    %230 = vmatprep.subr.bf16.mxu0 0
    %231 = vmatpush1.bf16.msra.mxu0 0
    %232 = vmatprep.subr.bf16.mxu0 0
    %233 = vmatpush1.bf16.msra.mxu0 0
    %234 = vmatprep.subr.bf16.mxu0 0
    %235 = vmatpush1.bf16.msra.mxu0 0
    %236 = vmatprep.subr.bf16.mxu0 0
    %237 = vmatpush1.bf16.msra.mxu0 0
    %238 = vmatprep.subr.bf16.mxu0 0
    %239 = vmatpush1.bf16.msra.mxu0 0
    %240 = vmatprep.subr.bf16.mxu0 0
    %241 = vmatpush1.bf16.msra.mxu0 0
    %242 = vmatprep.mubr.bf16.mxu0 0
    %243 = vmatmul.mubr.bf16.gmra.mrb[0].mxu0 %v160
    %v244 = vpop.f32.mrb[0].mxu0
    %v245 = vadd.f32 0.0, %v244
    %v246 = vpop.f32.mrb[0].mxu0
    %v247 = vpop.f32.mrb[0].mxu0
    %v248 = vadd.f32 0.0, %v247
    %v249 = vpop.f32.mrb[0].mxu0
    %250 = vdwg.mxu0
    %v251 = vpack.c.bf16 %v248, %v245
    %252 = vmatprep.subr.bf16.mxu0 0
    %253 = vmatpush1.bf16.msra.mxu0 %v194
    %254 = vmatprep.subr.bf16.mxu0 0
    %255 = vmatpush1.bf16.msra.mxu0 %v195
    %256 = vmatprep.subr.bf16.mxu0 0
    %257 = vmatpush1.bf16.msra.mxu0 %v196
    %258 = vmatprep.subr.bf16.mxu0 0
    %259 = vmatpush1.bf16.msra.mxu0 %v197
    %260 = vmatprep.subr.bf16.mxu0 0
    %261 = vmatpush1.bf16.msra.mxu0 %v198
    %262 = vmatprep.subr.bf16.mxu0 0
    %263 = vmatpush1.bf16.msra.mxu0 %v199
    %264 = vmatprep.subr.bf16.mxu0 0
    %265 = vmatpush1.bf16.msra.mxu0 %v200
    %266 = vmatprep.subr.bf16.mxu0 0
    %267 = vmatpush1.bf16.msra.mxu0 %v201
    %268 = vmatprep.subr.bf16.mxu0 0
    %269 = vmatpush1.bf16.msra.mxu0 0
    %270 = vmatprep.subr.bf16.mxu0 0
    %271 = vmatpush1.bf16.msra.mxu0 0
    %272 = vmatprep.subr.bf16.mxu0 0
    %273 = vmatpush1.bf16.msra.mxu0 0
    %274 = vmatprep.subr.bf16.mxu0 0
    %275 = vmatpush1.bf16.msra.mxu0 0
    %276 = vmatprep.subr.bf16.mxu0 0
    %277 = vmatpush1.bf16.msra.mxu0 0
    %278 = vmatprep.subr.bf16.mxu0 0
    %279 = vmatpush1.bf16.msra.mxu0 0
    %280 = vmatprep.subr.bf16.mxu0 0
    %281 = vmatpush1.bf16.msra.mxu0 0
    %282 = vmatprep.subr.bf16.mxu0 0
    %283 = vmatpush1.bf16.msra.mxu0 0
    %284 = vmatprep.mubr.bf16.mxu0 0
    %285 = vmatmul.mubr.bf16.gmra.mrb[0].mxu0 %v251
    %v286 = vpop.f32.mrb[0].mxu0
    %v287 = vadd.f32 0.0, %v286
    %v288 = vpop.f32.mrb[0].mxu0
    %v289 = vpop.f32.mrb[0].mxu0
    %v290 = vadd.f32 0.0, %v289
    %v291 = vpop.f32.mrb[0].mxu0
    %292 = vdwg.mxu0
    %v293 = vmul.f32 %v287, 2.0
    %v294 = vmul.f32 %v290, 2.0
    %v295 = vsub.f32 %v293, %v154
    %v296 = vsub.f32 %v294, %v155
    %v297 = vpack.c.bf16 %v296, %v295
    %298 = vmatprep.subr.bf16.mxu0 0
    %299 = vmatpush1.bf16.msra.mxu0 %v194
    %300 = vmatprep.subr.bf16.mxu0 0
    %301 = vmatpush1.bf16.msra.mxu0 %v195
    %302 = vmatprep.subr.bf16.mxu0 0
    %303 = vmatpush1.bf16.msra.mxu0 %v196
    %304 = vmatprep.subr.bf16.mxu0 0
    %305 = vmatpush1.bf16.msra.mxu0 %v197
    %306 = vmatprep.subr.bf16.mxu0 0
    %307 = vmatpush1.bf16.msra.mxu0 %v198
    %308 = vmatprep.subr.bf16.mxu0 0
    %309 = vmatpush1.bf16.msra.mxu0 %v199
    %310 = vmatprep.subr.bf16.mxu0 0
    %311 = vmatpush1.bf16.msra.mxu0 %v200
    %312 = vmatprep.subr.bf16.mxu0 0
    %313 = vmatpush1.bf16.msra.mxu0 %v201
    %314 = vmatprep.subr.bf16.mxu0 0
    %315 = vmatpush1.bf16.msra.mxu0 0
    %316 = vmatprep.subr.bf16.mxu0 0
    %317 = vmatpush1.bf16.msra.mxu0 0
    %318 = vmatprep.subr.bf16.mxu0 0
    %319 = vmatpush1.bf16.msra.mxu0 0
    %320 = vmatprep.subr.bf16.mxu0 0
    %321 = vmatpush1.bf16.msra.mxu0 0
    %322 = vmatprep.subr.bf16.mxu0 0
    %323 = vmatpush1.bf16.msra.mxu0 0
    %324 = vmatprep.subr.bf16.mxu0 0
    %325 = vmatpush1.bf16.msra.mxu0 0
    %326 = vmatprep.subr.bf16.mxu0 0
    %327 = vmatpush1.bf16.msra.mxu0 0
    %328 = vmatprep.subr.bf16.mxu0 0
    %329 = vmatpush1.bf16.msra.mxu0 0
    %330 = vmatprep.mubr.bf16.mxu0 0
    %331 = vmatmul.mubr.bf16.gmra.mrb[0].mxu0 %v297
    %v332 = vpop.f32.mrb[0].mxu0
    %v333 = vadd.f32 0.0, %v332
    %v334 = vpop.f32.mrb[0].mxu0
    %v335 = vpop.f32.mrb[0].mxu0
    %v336 = vadd.f32 0.0, %v335
    %v337 = vpop.f32.mrb[0].mxu0
    %338 = vdwg.mxu0
    %v339 = vmul.f32 %v333, 2.0
    %v340 = vmul.f32 %v336, 2.0
    %v341 = vsub.f32 %v339, %v245
    %v342 = vsub.f32 %v340, %v248
    %v343 = vpack.c.bf16 %v342, %v341
    %344 = vmatprep.subr.bf16.mxu0 0
    %345 = vmatpush1.bf16.msra.mxu0 %v194
    %346 = vmatprep.subr.bf16.mxu0 0
    %347 = vmatpush1.bf16.msra.mxu0 %v195
    %348 = vmatprep.subr.bf16.mxu0 0
    %349 = vmatpush1.bf16.msra.mxu0 %v196
    %350 = vmatprep.subr.bf16.mxu0 0
    %351 = vmatpush1.bf16.msra.mxu0 %v197
    %352 = vmatprep.subr.bf16.mxu0 0
    %353 = vmatpush1.bf16.msra.mxu0 %v198
    %354 = vmatprep.subr.bf16.mxu0 0
    %355 = vmatpush1.bf16.msra.mxu0 %v199
    %356 = vmatprep.subr.bf16.mxu0 0
    %357 = vmatpush1.bf16.msra.mxu0 %v200
    %358 = vmatprep.subr.bf16.mxu0 0
    %359 = vmatpush1.bf16.msra.mxu0 %v201
    %360 = vmatprep.subr.bf16.mxu0 0
    %361 = vmatpush1.bf16.msra.mxu0 0
    %362 = vmatprep.subr.bf16.mxu0 0
    %363 = vmatpush1.bf16.msra.mxu0 0
    %364 = vmatprep.subr.bf16.mxu0 0
    %365 = vmatpush1.bf16.msra.mxu0 0
    %366 = vmatprep.subr.bf16.mxu0 0
    %367 = vmatpush1.bf16.msra.mxu0 0
    %368 = vmatprep.subr.bf16.mxu0 0
    %369 = vmatpush1.bf16.msra.mxu0 0
    %370 = vmatprep.subr.bf16.mxu0 0
    %371 = vmatpush1.bf16.msra.mxu0 0
    %372 = vmatprep.subr.bf16.mxu0 0
    %373 = vmatpush1.bf16.msra.mxu0 0
    %374 = vmatprep.subr.bf16.mxu0 0
    %375 = vmatpush1.bf16.msra.mxu0 0
    %376 = vmatprep.mubr.bf16.mxu0 0
    %377 = vmatmul.mubr.bf16.gmra.mrb[0].mxu0 %v343
    %v378 = vpop.f32.mrb[0].mxu0
    %v379 = vadd.f32 0.0, %v378
    %v380 = vpop.f32.mrb[0].mxu0
    %v381 = vpop.f32.mrb[0].mxu0
    %v382 = vadd.f32 0.0, %v381
    %v383 = vpop.f32.mrb[0].mxu0
    %384 = vdwg.mxu0
    %v385 = vmul.f32 %v379, 2.0
    %v386 = vmul.f32 %v382, 2.0
    %v387 = vsub.f32 %v385, %v295
    %v388 = vsub.f32 %v386, %v296
    %v389 = vpack.c.bf16 %v388, %v387
    %390 = vmatprep.subr.bf16.mxu0 0
    %391 = vmatpush1.bf16.msra.mxu0 %v194
    %392 = vmatprep.subr.bf16.mxu0 0
    %393 = vmatpush1.bf16.msra.mxu0 %v195
    %394 = vmatprep.subr.bf16.mxu0 0
    %395 = vmatpush1.bf16.msra.mxu0 %v196
    %396 = vmatprep.subr.bf16.mxu0 0
    %397 = vmatpush1.bf16.msra.mxu0 %v197
    %398 = vmatprep.subr.bf16.mxu0 0
    %399 = vmatpush1.bf16.msra.mxu0 %v198
    %400 = vmatprep.subr.bf16.mxu0 0
    %401 = vmatpush1.bf16.msra.mxu0 %v199
    %402 = vmatprep.subr.bf16.mxu0 0
    %403 = vmatpush1.bf16.msra.mxu0 %v200
    %404 = vmatprep.subr.bf16.mxu0 0
    %405 = vmatpush1.bf16.msra.mxu0 %v201
    %406 = vmatprep.subr.bf16.mxu0 0
    %407 = vmatpush1.bf16.msra.mxu0 0
    %408 = vmatprep.subr.bf16.mxu0 0
    %409 = vmatpush1.bf16.msra.mxu0 0
    %410 = vmatprep.subr.bf16.mxu0 0
    %411 = vmatpush1.bf16.msra.mxu0 0
    %412 = vmatprep.subr.bf16.mxu0 0
    %413 = vmatpush1.bf16.msra.mxu0 0
    %414 = vmatprep.subr.bf16.mxu0 0
    %415 = vmatpush1.bf16.msra.mxu0 0
    %416 = vmatprep.subr.bf16.mxu0 0
    %417 = vmatpush1.bf16.msra.mxu0 0
    %418 = vmatprep.subr.bf16.mxu0 0
    %419 = vmatpush1.bf16.msra.mxu0 0
    %420 = vmatprep.subr.bf16.mxu0 0
    %421 = vmatpush1.bf16.msra.mxu0 0
    %422 = vmatprep.mubr.bf16.mxu0 0
    %423 = vmatmul.mubr.bf16.gmra.mrb[0].mxu0 %v389
    %v424 = vpop.f32.mrb[0].mxu0
    %v425 = vadd.f32 0.0, %v424
    %v426 = vpop.f32.mrb[0].mxu0
    %v427 = vpop.f32.mrb[0].mxu0
    %v428 = vadd.f32 0.0, %v427
    %v429 = vpop.f32.mrb[0].mxu0
    %430 = vdwg.mxu0
    %v431 = vmul.f32 %v425, 2.0
    %v432 = vmul.f32 %v428, 2.0
    %v433 = vsub.f32 %v431, %v341
    %v434 = vsub.f32 %v432, %v342
    %v435 = vpack.c.bf16 %v434, %v433
    %436 = vmatprep.subr.bf16.mxu0 0
    %437 = vmatpush1.bf16.msra.mxu0 %v194
    %438 = vmatprep.subr.bf16.mxu0 0
    %439 = vmatpush1.bf16.msra.mxu0 %v195
    %440 = vmatprep.subr.bf16.mxu0 0
    %441 = vmatpush1.bf16.msra.mxu0 %v196
    %442 = vmatprep.subr.bf16.mxu0 0
    %443 = vmatpush1.bf16.msra.mxu0 %v197
    %444 = vmatprep.subr.bf16.mxu0 0
    %445 = vmatpush1.bf16.msra.mxu0 %v198
    %446 = vmatprep.subr.bf16.mxu0 0
    %447 = vmatpush1.bf16.msra.mxu0 %v199
    %448 = vmatprep.subr.bf16.mxu0 0
    %449 = vmatpush1.bf16.msra.mxu0 %v200
    %450 = vmatprep.subr.bf16.mxu0 0
    %451 = vmatpush1.bf16.msra.mxu0 %v201
    %452 = vmatprep.subr.bf16.mxu0 0
    %453 = vmatpush1.bf16.msra.mxu0 0
    %454 = vmatprep.subr.bf16.mxu0 0
    %455 = vmatpush1.bf16.msra.mxu0 0
    %456 = vmatprep.subr.bf16.mxu0 0
    %457 = vmatpush1.bf16.msra.mxu0 0
    %458 = vmatprep.subr.bf16.mxu0 0
    %459 = vmatpush1.bf16.msra.mxu0 0
    %460 = vmatprep.subr.bf16.mxu0 0
    %461 = vmatpush1.bf16.msra.mxu0 0
    %462 = vmatprep.subr.bf16.mxu0 0
    %463 = vmatpush1.bf16.msra.mxu0 0
    %464 = vmatprep.subr.bf16.mxu0 0
    %465 = vmatpush1.bf16.msra.mxu0 0
    %466 = vmatprep.subr.bf16.mxu0 0
    %467 = vmatpush1.bf16.msra.mxu0 0
    %468 = vmatprep.mubr.bf16.mxu0 0
    %469 = vmatmul.mubr.bf16.gmra.mrb[0].mxu0 %v435
    %v470 = vpop.f32.mrb[0].mxu0
    %v471 = vadd.f32 0.0, %v470
    %v472 = vpop.f32.mrb[0].mxu0
    %v473 = vpop.f32.mrb[0].mxu0
    %v474 = vadd.f32 0.0, %v473
    %v475 = vpop.f32.mrb[0].mxu0
    %476 = vdwg.mxu0
    %v477 = vmul.f32 %v471, 2.0
    %v478 = vmul.f32 %v474, 2.0
    %v479 = vsub.f32 %v477, %v387
    %v480 = vsub.f32 %v478, %v388
    %v481 = vpack.c.bf16 %v480, %v479
    %482 = vmatprep.subr.bf16.mxu0 0
    %483 = vmatpush1.bf16.msra.mxu0 %v194
    %484 = vmatprep.subr.bf16.mxu0 0
    %485 = vmatpush1.bf16.msra.mxu0 %v195
    %486 = vmatprep.subr.bf16.mxu0 0
    %487 = vmatpush1.bf16.msra.mxu0 %v196
    %488 = vmatprep.subr.bf16.mxu0 0
    %489 = vmatpush1.bf16.msra.mxu0 %v197
    %490 = vmatprep.subr.bf16.mxu0 0
    %491 = vmatpush1.bf16.msra.mxu0 %v198
    %492 = vmatprep.subr.bf16.mxu0 0
    %493 = vmatpush1.bf16.msra.mxu0 %v199
    %494 = vmatprep.subr.bf16.mxu0 0
    %495 = vmatpush1.bf16.msra.mxu0 %v200
    %496 = vmatprep.subr.bf16.mxu0 0
    %497 = vmatpush1.bf16.msra.mxu0 %v201
    %498 = vmatprep.subr.bf16.mxu0 0
    %499 = vmatpush1.bf16.msra.mxu0 0
    %500 = vmatprep.subr.bf16.mxu0 0
    %501 = vmatpush1.bf16.msra.mxu0 0
    %502 = vmatprep.subr.bf16.mxu0 0
    %503 = vmatpush1.bf16.msra.mxu0 0
    %504 = vmatprep.subr.bf16.mxu0 0
    %505 = vmatpush1.bf16.msra.mxu0 0
    %506 = vmatprep.subr.bf16.mxu0 0
    %507 = vmatpush1.bf16.msra.mxu0 0
    %508 = vmatprep.subr.bf16.mxu0 0
    %509 = vmatpush1.bf16.msra.mxu0 0
    %510 = vmatprep.subr.bf16.mxu0 0
    %511 = vmatpush1.bf16.msra.mxu0 0
    %512 = vmatprep.subr.bf16.mxu0 0
    %513 = vmatpush1.bf16.msra.mxu0 0
    %514 = vmatprep.mubr.bf16.mxu0 0
    %515 = vmatmul.mubr.bf16.gmra.mrb[0].mxu0 %v481
    %v516 = vpop.f32.mrb[0].mxu0
    %v517 = vadd.f32 0.0, %v516
    %v518 = vpop.f32.mrb[0].mxu0
    %v519 = vpop.f32.mrb[0].mxu0
    %v520 = vadd.f32 0.0, %v519
    %v521 = vpop.f32.mrb[0].mxu0
    %522 = vdwg.mxu0
    %v523 = vmul.f32 %v517, 2.0
    %v524 = vmul.f32 %v520, 2.0
    %v525 = vsub.f32 %v523, %v433
    %v526 = vsub.f32 %v524, %v434
    %v527 = vpack.c.bf16 %v526, %v525
    %v528 = vld [vmem:[#allocation7] sm:$0xf]
    %v529 = vld [vmem:[#allocation7 + $0x4] sm:$0xf]
    %v530 = vld [vmem:[#allocation7 + $0x8] sm:$0xf]
    %v531 = vld [vmem:[#allocation7 + $0xc] sm:$0xf]
    %v532 = vld [vmem:[#allocation7 + $0x10] sm:$0xf]
    %v533 = vld [vmem:[#allocation7 + $0x14] sm:$0xf]
    %v534 = vld [vmem:[#allocation7 + $0x18] sm:$0xf]
    %v535 = vld [vmem:[#allocation7 + $0x1c] sm:$0xf]
    %v536 = vld [vmem:[#allocation7 + $0x20] sm:$0xf]
    %v537 = vld [vmem:[#allocation7 + $0x24] sm:$0xf]
    %v538 = vld [vmem:[#allocation7 + $0x28] sm:$0xf]
    %v539 = vld [vmem:[#allocation7 + $0x2c] sm:$0xf]
    %v540 = vld [vmem:[#allocation7 + $0x30] sm:$0xf]
    %v541 = vld [vmem:[#allocation7 + $0x34] sm:$0xf]
    %v542 = vld [vmem:[#allocation7 + $0x38] sm:$0xf]
    %v543 = vld [vmem:[#allocation7 + $0x3c] sm:$0xf]
    %v544 = vld [vmem:[#allocation8] sm:$0xff]
    %v545 = vld [vmem:[#allocation8 + $0x8] sm:$0xff]
    %v546 = vld [vmem:[#allocation8 + $0x10] sm:$0xff]
    %v547 = vld [vmem:[#allocation8 + $0x18] sm:$0xff]
    %v548 = vld [vmem:[#allocation8 + $0x20] sm:$0xff]
    %v549 = vld [vmem:[#allocation8 + $0x28] sm:$0xff]
    %v550 = vld [vmem:[#allocation8 + $0x30] sm:$0xff]
    %v551 = vld [vmem:[#allocation8 + $0x38] sm:$0xff]
    %v552 = vld [vmem:[#allocation8 + $0x40] sm:$0xff]
    %v553 = vld [vmem:[#allocation8 + $0x48] sm:$0xff]
    %v554 = vld [vmem:[#allocation8 + $0x50] sm:$0xff]
    %v555 = vld [vmem:[#allocation8 + $0x58] sm:$0xff]
    %v556 = vld [vmem:[#allocation8 + $0x60] sm:$0xff]
    %v557 = vld [vmem:[#allocation8 + $0x68] sm:$0xff]
    %v558 = vld [vmem:[#allocation8 + $0x70] sm:$0xff]
    %v559 = vld [vmem:[#allocation8 + $0x78] sm:$0xff]
    %561 = vset.pattern.permute.xlu0 0
    %562 = vperm.xlu0 %561, %v544
    %v563 = vpop.permute.xlu0 %562
    %566 = vset.pattern.permute.xlu0 0
    %567 = vperm.xlu0 %566, %v545
    %v568 = vpop.permute.xlu0 %567
    %571 = vset.pattern.permute.xlu0 0
    %572 = vperm.xlu0 %571, %v546
    %v573 = vpop.permute.xlu0 %572
    %576 = vset.pattern.permute.xlu0 0
    %577 = vperm.xlu0 %576, %v547
    %v578 = vpop.permute.xlu0 %577
    %581 = vset.pattern.permute.xlu0 0
    %582 = vperm.xlu0 %581, %v548
    %v583 = vpop.permute.xlu0 %582
    %586 = vset.pattern.permute.xlu0 0
    %587 = vperm.xlu0 %586, %v549
    %v588 = vpop.permute.xlu0 %587
    %591 = vset.pattern.permute.xlu0 0
    %592 = vperm.xlu0 %591, %v550
    %v593 = vpop.permute.xlu0 %592
    %596 = vset.pattern.permute.xlu0 0
    %597 = vperm.xlu0 %596, %v551
    %v598 = vpop.permute.xlu0 %597
    %601 = vset.pattern.permute.xlu0 0
    %602 = vperm.xlu0 %601, %v552
    %v603 = vpop.permute.xlu0 %602
    %606 = vset.pattern.permute.xlu0 0
    %607 = vperm.xlu0 %606, %v553
    %v608 = vpop.permute.xlu0 %607
    %611 = vset.pattern.permute.xlu0 0
    %612 = vperm.xlu0 %611, %v554
    %v613 = vpop.permute.xlu0 %612
    %616 = vset.pattern.permute.xlu0 0
    %617 = vperm.xlu0 %616, %v555
    %v618 = vpop.permute.xlu0 %617
    %621 = vset.pattern.permute.xlu0 0
    %622 = vperm.xlu0 %621, %v556
    %v623 = vpop.permute.xlu0 %622
    %626 = vset.pattern.permute.xlu0 0
    %627 = vperm.xlu0 %626, %v557
    %v628 = vpop.permute.xlu0 %627
    %631 = vset.pattern.permute.xlu0 0
    %632 = vperm.xlu0 %631, %v558
    %v633 = vpop.permute.xlu0 %632
    %636 = vset.pattern.permute.xlu0 0
    %637 = vperm.xlu0 %636, %v559
    %v638 = vpop.permute.xlu0 %637
    %v656 = vunpack.c.l.b16 %v528
    %v657 = vunpack.c.l.b16 %v529
    %v658 = vunpack.c.l.b16 %v530
    %v659 = vunpack.c.l.b16 %v531
    %v660 = vunpack.c.l.b16 %v532
    %v661 = vunpack.c.l.b16 %v533
    %v662 = vunpack.c.l.b16 %v534
    %v663 = vunpack.c.l.b16 %v535
    %v664 = vunpack.c.l.b16 %v536
    %v665 = vunpack.c.l.b16 %v537
    %v666 = vunpack.c.l.b16 %v538
    %v667 = vunpack.c.l.b16 %v539
    %v668 = vunpack.c.l.b16 %v540
    %v669 = vunpack.c.l.b16 %v541
    %v670 = vunpack.c.l.b16 %v542
    %v671 = vunpack.c.l.b16 %v543
    %v672 = vpack.c.b16 %v657, %v656
    %v673 = vpack.c.b16 %v659, %v658
    %v674 = vpack.c.b16 %v661, %v660
    %v675 = vpack.c.b16 %v663, %v662
    %v676 = vpack.c.b16 %v665, %v664
    %v677 = vpack.c.b16 %v667, %v666
    %v678 = vpack.c.b16 %v669, %v668
    %v679 = vpack.c.b16 %v671, %v670
    %688 = vmatprep.subr.bf16.mxu0 0
    %689 = vmatpush1.bf16.msra.mxu0 %v160
    %690 = vmatprep.subr.bf16.mxu0 0
    %691 = vmatpush1.bf16.msra.mxu0 %v251
    %692 = vmatprep.subr.bf16.mxu0 0
    %693 = vmatpush1.bf16.msra.mxu0 %v297
    %694 = vmatprep.subr.bf16.mxu0 0
    %695 = vmatpush1.bf16.msra.mxu0 %v343
    %696 = vmatprep.subr.bf16.mxu0 0
    %697 = vmatpush1.bf16.msra.mxu0 %v389
    %698 = vmatprep.subr.bf16.mxu0 0
    %699 = vmatpush1.bf16.msra.mxu0 %v435
    %700 = vmatprep.subr.bf16.mxu0 0
    %701 = vmatpush1.bf16.msra.mxu0 %v481
    %702 = vmatprep.subr.bf16.mxu0 0
    %703 = vmatpush1.bf16.msra.mxu0 %v527
    %704 = vmatprep.subr.bf16.mxu0 0
    %705 = vmatpush1.bf16.msra.mxu0 0
    %706 = vmatprep.subr.bf16.mxu0 0
    %707 = vmatpush1.bf16.msra.mxu0 0
    %708 = vmatprep.subr.bf16.mxu0 0
    %709 = vmatpush1.bf16.msra.mxu0 0
    %710 = vmatprep.subr.bf16.mxu0 0
    %711 = vmatpush1.bf16.msra.mxu0 0
    %712 = vmatprep.subr.bf16.mxu0 0
    %713 = vmatpush1.bf16.msra.mxu0 0
    %714 = vmatprep.subr.bf16.mxu0 0
    %715 = vmatpush1.bf16.msra.mxu0 0
    %716 = vmatprep.subr.bf16.mxu0 0
    %717 = vmatpush1.bf16.msra.mxu0 0
    %718 = vmatprep.subr.bf16.mxu0 0
    %719 = vmatpush1.bf16.msra.mxu0 0
    %720 = vmatprep.mubr.bf16.mxu0 0
    %721 = vmatmul.mubr.bf16.gmra.mrb[0].mxu0 %v672
    %v722 = vpop.f32.mrb[0].mxu0
    %v723 = vadd.f32 %v563, %v722
    %v724 = vpop.f32.mrb[0].mxu0
    %v725 = vpop.f32.mrb[0].mxu0
    %v726 = vadd.f32 %v568, %v725
    %v727 = vpop.f32.mrb[0].mxu0
    %728 = vmatprep.mubr.bf16.mxu0 0
    %729 = vmatmul.mubr.bf16.gmra.mrb[0].mxu0 %v673
    %v730 = vpop.f32.mrb[0].mxu0
    %v731 = vadd.f32 %v573, %v730
    %v732 = vpop.f32.mrb[0].mxu0
    %v733 = vpop.f32.mrb[0].mxu0
    %v734 = vadd.f32 %v578, %v733
    %v735 = vpop.f32.mrb[0].mxu0
    %736 = vmatprep.mubr.bf16.mxu0 0
    %737 = vmatmul.mubr.bf16.gmra.mrb[0].mxu0 %v674
    %v738 = vpop.f32.mrb[0].mxu0
    %v739 = vadd.f32 %v583, %v738
    %v740 = vpop.f32.mrb[0].mxu0
    %v741 = vpop.f32.mrb[0].mxu0
    %v742 = vadd.f32 %v588, %v741
    %v743 = vpop.f32.mrb[0].mxu0
    %744 = vmatprep.mubr.bf16.mxu0 0
    %745 = vmatmul.mubr.bf16.gmra.mrb[0].mxu0 %v675
    %v746 = vpop.f32.mrb[0].mxu0
    %v747 = vadd.f32 %v593, %v746
    %v748 = vpop.f32.mrb[0].mxu0
    %v749 = vpop.f32.mrb[0].mxu0
    %v750 = vadd.f32 %v598, %v749
    %v751 = vpop.f32.mrb[0].mxu0
    %752 = vmatprep.mubr.bf16.mxu0 0
    %753 = vmatmul.mubr.bf16.gmra.mrb[0].mxu0 %v676
    %v754 = vpop.f32.mrb[0].mxu0
    %v755 = vadd.f32 %v603, %v754
    %v756 = vpop.f32.mrb[0].mxu0
    %v757 = vpop.f32.mrb[0].mxu0
    %v758 = vadd.f32 %v608, %v757
    %v759 = vpop.f32.mrb[0].mxu0
    %760 = vmatprep.mubr.bf16.mxu0 0
    %761 = vmatmul.mubr.bf16.gmra.mrb[0].mxu0 %v677
    %v762 = vpop.f32.mrb[0].mxu0
    %v763 = vadd.f32 %v613, %v762
    %v764 = vpop.f32.mrb[0].mxu0
    %v765 = vpop.f32.mrb[0].mxu0
    %v766 = vadd.f32 %v618, %v765
    %v767 = vpop.f32.mrb[0].mxu0
    %768 = vmatprep.mubr.bf16.mxu0 0
    %769 = vmatmul.mubr.bf16.gmra.mrb[0].mxu0 %v678
    %v770 = vpop.f32.mrb[0].mxu0
    %v771 = vadd.f32 %v623, %v770
    %v772 = vpop.f32.mrb[0].mxu0
    %v773 = vpop.f32.mrb[0].mxu0
    %v774 = vadd.f32 %v628, %v773
    %v775 = vpop.f32.mrb[0].mxu0
    %776 = vmatprep.mubr.bf16.mxu0 0
    %777 = vmatmul.mubr.bf16.gmra.mrb[0].mxu0 %v679
    %v778 = vpop.f32.mrb[0].mxu0
    %v779 = vadd.f32 %v633, %v778
    %v780 = vpop.f32.mrb[0].mxu0
    %v781 = vpop.f32.mrb[0].mxu0
    %v782 = vadd.f32 %v638, %v781
    %v783 = vpop.f32.mrb[0].mxu0
    %784 = vdwg.mxu0
    %v785 = vmax.f32 %v723, 0.0
    %v786 = vmax.f32 %v726, 0.0
    %v787 = vmax.f32 %v731, 0.0
    %v788 = vmax.f32 %v734, 0.0
    %v789 = vmax.f32 %v739, 0.0
    %v790 = vmax.f32 %v742, 0.0
    %v791 = vmax.f32 %v747, 0.0
    %v792 = vmax.f32 %v750, 0.0
    %v793 = vadd.f32 %v785, %v755
    %v794 = vadd.f32 %v786, %v758
    %v795 = vadd.f32 %v787, %v763
    %v796 = vadd.f32 %v788, %v766
    %v797 = vadd.f32 %v789, %v771
    %v798 = vadd.f32 %v790, %v774
    %v799 = vadd.f32 %v791, %v779
    %v800 = vadd.f32 %v792, %v782
    %v801 = vpack.c.bf16 %v794, %v793
    %v802 = vpack.c.bf16 %v796, %v795
    %v803 = vpack.c.bf16 %v798, %v797
    %v804 = vpack.c.bf16 %v800, %v799
    %v805 = vunpack.c.l.bf16 %v801
    %v806 = vunpack.c.h.bf16 %v801
    %v807 = vunpack.c.l.bf16 %v802
    %v808 = vunpack.c.h.bf16 %v802
    %v809 = vunpack.c.l.bf16 %v803
    %v810 = vunpack.c.h.bf16 %v803
    %v811 = vunpack.c.l.bf16 %v804
    %v812 = vunpack.c.h.bf16 %v804
    %813 = vmatprep.subr.bf16.mxu0 0
    %814 = vmatpush1.bf16.msra.mxu0 %v194
    %815 = vmatprep.subr.bf16.mxu0 0
    %816 = vmatpush1.bf16.msra.mxu0 %v195
    %817 = vmatprep.subr.bf16.mxu0 0
    %818 = vmatpush1.bf16.msra.mxu0 %v196
    %819 = vmatprep.subr.bf16.mxu0 0
    %820 = vmatpush1.bf16.msra.mxu0 %v197
    %821 = vmatprep.subr.bf16.mxu0 0
    %822 = vmatpush1.bf16.msra.mxu0 %v198
    %823 = vmatprep.subr.bf16.mxu0 0
    %824 = vmatpush1.bf16.msra.mxu0 %v199
    %825 = vmatprep.subr.bf16.mxu0 0
    %826 = vmatpush1.bf16.msra.mxu0 %v200
    %827 = vmatprep.subr.bf16.mxu0 0
    %828 = vmatpush1.bf16.msra.mxu0 %v201
    %829 = vmatprep.subr.bf16.mxu0 0
    %830 = vmatpush1.bf16.msra.mxu0 0
    %831 = vmatprep.subr.bf16.mxu0 0
    %832 = vmatpush1.bf16.msra.mxu0 0
    %833 = vmatprep.subr.bf16.mxu0 0
    %834 = vmatpush1.bf16.msra.mxu0 0
    %835 = vmatprep.subr.bf16.mxu0 0
    %836 = vmatpush1.bf16.msra.mxu0 0
    %837 = vmatprep.subr.bf16.mxu0 0
    %838 = vmatpush1.bf16.msra.mxu0 0
    %839 = vmatprep.subr.bf16.mxu0 0
    %840 = vmatpush1.bf16.msra.mxu0 0
    %841 = vmatprep.subr.bf16.mxu0 0
    %842 = vmatpush1.bf16.msra.mxu0 0
    %843 = vmatprep.subr.bf16.mxu0 0
    %844 = vmatpush1.bf16.msra.mxu0 0
    %845 = vmatprep.mubr.bf16.mxu0 0
    %846 = vmatmul.mubr.bf16.gmra.mrb[0].mxu0 %v801
    %v847 = vpop.f32.mrb[0].mxu0
    %v848 = vadd.f32 0.0, %v847
    %v849 = vpop.f32.mrb[0].mxu0
    %v850 = vpop.f32.mrb[0].mxu0
    %v851 = vadd.f32 0.0, %v850
    %v852 = vpop.f32.mrb[0].mxu0
    %853 = vmatprep.mubr.bf16.mxu0 0
    %854 = vmatmul.mubr.bf16.gmra.mrb[0].mxu0 %v802
    %v855 = vpop.f32.mrb[0].mxu0
    %v856 = vadd.f32 0.0, %v855
    %v857 = vpop.f32.mrb[0].mxu0
    %v858 = vpop.f32.mrb[0].mxu0
    %v859 = vadd.f32 0.0, %v858
    %v860 = vpop.f32.mrb[0].mxu0
    %861 = vmatprep.mubr.bf16.mxu0 0
    %862 = vmatmul.mubr.bf16.gmra.mrb[0].mxu0 %v803
    %v863 = vpop.f32.mrb[0].mxu0
    %v864 = vadd.f32 0.0, %v863
    %v865 = vpop.f32.mrb[0].mxu0
    %v866 = vpop.f32.mrb[0].mxu0
    %v867 = vadd.f32 0.0, %v866
    %v868 = vpop.f32.mrb[0].mxu0
    %869 = vmatprep.mubr.bf16.mxu0 0
    %870 = vmatmul.mubr.bf16.gmra.mrb[0].mxu0 %v804
    %v871 = vpop.f32.mrb[0].mxu0
    %v872 = vadd.f32 0.0, %v871
    %v873 = vpop.f32.mrb[0].mxu0
    %v874 = vpop.f32.mrb[0].mxu0
    %v875 = vadd.f32 0.0, %v874
    %v876 = vpop.f32.mrb[0].mxu0
    %877 = vdwg.mxu0
    %v878 = vpack.c.bf16 %v851, %v848
    %v879 = vpack.c.bf16 %v859, %v856
    %v880 = vpack.c.bf16 %v867, %v864
    %v881 = vpack.c.bf16 %v875, %v872
    %882 = vmatprep.subr.bf16.mxu0 0
    %883 = vmatpush1.bf16.msra.mxu0 %v194
    %884 = vmatprep.subr.bf16.mxu0 0
    %885 = vmatpush1.bf16.msra.mxu0 %v195
    %886 = vmatprep.subr.bf16.mxu0 0
    %887 = vmatpush1.bf16.msra.mxu0 %v196
    %888 = vmatprep.subr.bf16.mxu0 0
    %889 = vmatpush1.bf16.msra.mxu0 %v197
    %890 = vmatprep.subr.bf16.mxu0 0
    %891 = vmatpush1.bf16.msra.mxu0 %v198
    %892 = vmatprep.subr.bf16.mxu0 0
    %893 = vmatpush1.bf16.msra.mxu0 %v199
    %894 = vmatprep.subr.bf16.mxu0 0
    %895 = vmatpush1.bf16.msra.mxu0 %v200
    %896 = vmatprep.subr.bf16.mxu0 0
    %897 = vmatpush1.bf16.msra.mxu0 %v201
    %898 = vmatprep.subr.bf16.mxu0 0
    %899 = vmatpush1.bf16.msra.mxu0 0
    %900 = vmatprep.subr.bf16.mxu0 0
    %901 = vmatpush1.bf16.msra.mxu0 0
    %902 = vmatprep.subr.bf16.mxu0 0
    %903 = vmatpush1.bf16.msra.mxu0 0
    %904 = vmatprep.subr.bf16.mxu0 0
    %905 = vmatpush1.bf16.msra.mxu0 0
    %906 = vmatprep.subr.bf16.mxu0 0
    %907 = vmatpush1.bf16.msra.mxu0 0
    %908 = vmatprep.subr.bf16.mxu0 0
    %909 = vmatpush1.bf16.msra.mxu0 0
    %910 = vmatprep.subr.bf16.mxu0 0
    %911 = vmatpush1.bf16.msra.mxu0 0
    %912 = vmatprep.subr.bf16.mxu0 0
    %913 = vmatpush1.bf16.msra.mxu0 0
    %914 = vmatprep.mubr.bf16.mxu0 0
    %915 = vmatmul.mubr.bf16.gmra.mrb[0].mxu0 %v878
    %v916 = vpop.f32.mrb[0].mxu0
    %v917 = vadd.f32 0.0, %v916
    %v918 = vpop.f32.mrb[0].mxu0
    %v919 = vpop.f32.mrb[0].mxu0
    %v920 = vadd.f32 0.0, %v919
    %v921 = vpop.f32.mrb[0].mxu0
    %922 = vmatprep.mubr.bf16.mxu0 0
    %923 = vmatmul.mubr.bf16.gmra.mrb[0].mxu0 %v879
    %v924 = vpop.f32.mrb[0].mxu0
    %v925 = vadd.f32 0.0, %v924
    %v926 = vpop.f32.mrb[0].mxu0
    %v927 = vpop.f32.mrb[0].mxu0
    %v928 = vadd.f32 0.0, %v927
    %v929 = vpop.f32.mrb[0].mxu0
    %930 = vmatprep.mubr.bf16.mxu0 0
    %931 = vmatmul.mubr.bf16.gmra.mrb[0].mxu0 %v880
    %v932 = vpop.f32.mrb[0].mxu0
    %v933 = vadd.f32 0.0, %v932
    %v934 = vpop.f32.mrb[0].mxu0
    %v935 = vpop.f32.mrb[0].mxu0
    %v936 = vadd.f32 0.0, %v935
    %v937 = vpop.f32.mrb[0].mxu0
    %938 = vmatprep.mubr.bf16.mxu0 0
    %939 = vmatmul.mubr.bf16.gmra.mrb[0].mxu0 %v881
    %v940 = vpop.f32.mrb[0].mxu0
    %v941 = vadd.f32 0.0, %v940
    %v942 = vpop.f32.mrb[0].mxu0
    %v943 = vpop.f32.mrb[0].mxu0
    %v944 = vadd.f32 0.0, %v943
    %v945 = vpop.f32.mrb[0].mxu0
    %946 = vdwg.mxu0
    %v947 = vmul.f32 %v917, 2.0
    %v948 = vmul.f32 %v920, 2.0
    %v949 = vmul.f32 %v925, 2.0
    %v950 = vmul.f32 %v928, 2.0
    %v951 = vmul.f32 %v933, 2.0
    %v952 = vmul.f32 %v936, 2.0
    %v953 = vmul.f32 %v941, 2.0
    %v954 = vmul.f32 %v944, 2.0
    %v955 = vsub.f32 %v947, %v805
    %v956 = vsub.f32 %v948, %v806
    %v957 = vsub.f32 %v949, %v807
    %v958 = vsub.f32 %v950, %v808
    %v959 = vsub.f32 %v951, %v809
    %v960 = vsub.f32 %v952, %v810
    %v961 = vsub.f32 %v953, %v811
    %v962 = vsub.f32 %v954, %v812
    %v963 = vpack.c.bf16 %v956, %v955
    %v964 = vpack.c.bf16 %v958, %v957
    %v965 = vpack.c.bf16 %v960, %v959
    %v966 = vpack.c.bf16 %v962, %v961
    %967 = vmatprep.subr.bf16.mxu0 0
    %968 = vmatpush1.bf16.msra.mxu0 %v194
    %969 = vmatprep.subr.bf16.mxu0 0
    %970 = vmatpush1.bf16.msra.mxu0 %v195
    %971 = vmatprep.subr.bf16.mxu0 0
    %972 = vmatpush1.bf16.msra.mxu0 %v196
    %973 = vmatprep.subr.bf16.mxu0 0
    %974 = vmatpush1.bf16.msra.mxu0 %v197
    %975 = vmatprep.subr.bf16.mxu0 0
    %976 = vmatpush1.bf16.msra.mxu0 %v198
    %977 = vmatprep.subr.bf16.mxu0 0
    %978 = vmatpush1.bf16.msra.mxu0 %v199
    %979 = vmatprep.subr.bf16.mxu0 0
    %980 = vmatpush1.bf16.msra.mxu0 %v200
    %981 = vmatprep.subr.bf16.mxu0 0
    %982 = vmatpush1.bf16.msra.mxu0 %v201
    %983 = vmatprep.subr.bf16.mxu0 0
    %984 = vmatpush1.bf16.msra.mxu0 0
    %985 = vmatprep.subr.bf16.mxu0 0
    %986 = vmatpush1.bf16.msra.mxu0 0
    %987 = vmatprep.subr.bf16.mxu0 0
    %988 = vmatpush1.bf16.msra.mxu0 0
    %989 = vmatprep.subr.bf16.mxu0 0
    %990 = vmatpush1.bf16.msra.mxu0 0
    %991 = vmatprep.subr.bf16.mxu0 0
    %992 = vmatpush1.bf16.msra.mxu0 0
    %993 = vmatprep.subr.bf16.mxu0 0
    %994 = vmatpush1.bf16.msra.mxu0 0
    %995 = vmatprep.subr.bf16.mxu0 0
    %996 = vmatpush1.bf16.msra.mxu0 0
    %997 = vmatprep.subr.bf16.mxu0 0
    %998 = vmatpush1.bf16.msra.mxu0 0
    %999 = vmatprep.mubr.bf16.mxu0 0
    %1000 = vmatmul.mubr.bf16.gmra.mrb[0].mxu0 %v963
    %v1001 = vpop.f32.mrb[0].mxu0
    %v1002 = vadd.f32 0.0, %v1001
    %v1003 = vpop.f32.mrb[0].mxu0
    %v1004 = vpop.f32.mrb[0].mxu0
    %v1005 = vadd.f32 0.0, %v1004
    %v1006 = vpop.f32.mrb[0].mxu0
    %1007 = vmatprep.mubr.bf16.mxu0 0
    %1008 = vmatmul.mubr.bf16.gmra.mrb[0].mxu0 %v964
    %v1009 = vpop.f32.mrb[0].mxu0
    %v1010 = vadd.f32 0.0, %v1009
    %v1011 = vpop.f32.mrb[0].mxu0
    %v1012 = vpop.f32.mrb[0].mxu0
    %v1013 = vadd.f32 0.0, %v1012
    %v1014 = vpop.f32.mrb[0].mxu0
    %1015 = vmatprep.mubr.bf16.mxu0 0
    %1016 = vmatmul.mubr.bf16.gmra.mrb[0].mxu0 %v965
    %v1017 = vpop.f32.mrb[0].mxu0
    %v1018 = vadd.f32 0.0, %v1017
    %v1019 = vpop.f32.mrb[0].mxu0
    %v1020 = vpop.f32.mrb[0].mxu0
    %v1021 = vadd.f32 0.0, %v1020
    %v1022 = vpop.f32.mrb[0].mxu0
    %1023 = vmatprep.mubr.bf16.mxu0 0
    %1024 = vmatmul.mubr.bf16.gmra.mrb[0].mxu0 %v966
    %v1025 = vpop.f32.mrb[0].mxu0
    %v1026 = vadd.f32 0.0, %v1025
    %v1027 = vpop.f32.mrb[0].mxu0
    %v1028 = vpop.f32.mrb[0].mxu0
    %v1029 = vadd.f32 0.0, %v1028
    %v1030 = vpop.f32.mrb[0].mxu0
    %1031 = vdwg.mxu0
    %v1032 = vmul.f32 %v1002, 2.0
    %v1033 = vmul.f32 %v1005, 2.0
    %v1034 = vmul.f32 %v1010, 2.0
    %v1035 = vmul.f32 %v1013, 2.0
    %v1036 = vmul.f32 %v1018, 2.0
    %v1037 = vmul.f32 %v1021, 2.0
    %v1038 = vmul.f32 %v1026, 2.0
    %v1039 = vmul.f32 %v1029, 2.0
    %v1040 = vsub.f32 %v1032, %v848
    %v1041 = vsub.f32 %v1033, %v851
    %v1042 = vsub.f32 %v1034, %v856
    %v1043 = vsub.f32 %v1035, %v859
    %v1044 = vsub.f32 %v1036, %v864
    %v1045 = vsub.f32 %v1037, %v867
    %v1046 = vsub.f32 %v1038, %v872
    %v1047 = vsub.f32 %v1039, %v875
    %v1048 = vpack.c.bf16 %v1041, %v1040
    %v1049 = vpack.c.bf16 %v1043, %v1042
    %v1050 = vpack.c.bf16 %v1045, %v1044
    %v1051 = vpack.c.bf16 %v1047, %v1046
    %1052 = vmatprep.subr.bf16.mxu0 0
    %1053 = vmatpush1.bf16.msra.mxu0 %v194
    %1054 = vmatprep.subr.bf16.mxu0 0
    %1055 = vmatpush1.bf16.msra.mxu0 %v195
    %1056 = vmatprep.subr.bf16.mxu0 0
    %1057 = vmatpush1.bf16.msra.mxu0 %v196
    %1058 = vmatprep.subr.bf16.mxu0 0
    %1059 = vmatpush1.bf16.msra.mxu0 %v197
    %1060 = vmatprep.subr.bf16.mxu0 0
    %1061 = vmatpush1.bf16.msra.mxu0 %v198
    %1062 = vmatprep.subr.bf16.mxu0 0
    %1063 = vmatpush1.bf16.msra.mxu0 %v199
    %1064 = vmatprep.subr.bf16.mxu0 0
    %1065 = vmatpush1.bf16.msra.mxu0 %v200
    %1066 = vmatprep.subr.bf16.mxu0 0
    %1067 = vmatpush1.bf16.msra.mxu0 %v201
    %1068 = vmatprep.subr.bf16.mxu0 0
    %1069 = vmatpush1.bf16.msra.mxu0 0
    %1070 = vmatprep.subr.bf16.mxu0 0
    %1071 = vmatpush1.bf16.msra.mxu0 0
    %1072 = vmatprep.subr.bf16.mxu0 0
    %1073 = vmatpush1.bf16.msra.mxu0 0
    %1074 = vmatprep.subr.bf16.mxu0 0
    %1075 = vmatpush1.bf16.msra.mxu0 0
    %1076 = vmatprep.subr.bf16.mxu0 0
    %1077 = vmatpush1.bf16.msra.mxu0 0
    %1078 = vmatprep.subr.bf16.mxu0 0
    %1079 = vmatpush1.bf16.msra.mxu0 0
    %1080 = vmatprep.subr.bf16.mxu0 0
    %1081 = vmatpush1.bf16.msra.mxu0 0
    %1082 = vmatprep.subr.bf16.mxu0 0
    %1083 = vmatpush1.bf16.msra.mxu0 0
    %1084 = vmatprep.mubr.bf16.mxu0 0
    %1085 = vmatmul.mubr.bf16.gmra.mrb[0].mxu0 %v1048
    %v1086 = vpop.f32.mrb[0].mxu0
    %v1087 = vadd.f32 0.0, %v1086
    %v1088 = vpop.f32.mrb[0].mxu0
    %v1089 = vpop.f32.mrb[0].mxu0
    %v1090 = vadd.f32 0.0, %v1089
    %v1091 = vpop.f32.mrb[0].mxu0
    %1092 = vmatprep.mubr.bf16.mxu0 0
    %1093 = vmatmul.mubr.bf16.gmra.mrb[0].mxu0 %v1049
    %v1094 = vpop.f32.mrb[0].mxu0
    %v1095 = vadd.f32 0.0, %v1094
    %v1096 = vpop.f32.mrb[0].mxu0
    %v1097 = vpop.f32.mrb[0].mxu0
    %v1098 = vadd.f32 0.0, %v1097
    %v1099 = vpop.f32.mrb[0].mxu0
    %1100 = vmatprep.mubr.bf16.mxu0 0
    %1101 = vmatmul.mubr.bf16.gmra.mrb[0].mxu0 %v1050
    %v1102 = vpop.f32.mrb[0].mxu0
    %v1103 = vadd.f32 0.0, %v1102
    %v1104 = vpop.f32.mrb[0].mxu0
    %v1105 = vpop.f32.mrb[0].mxu0
    %v1106 = vadd.f32 0.0, %v1105
    %v1107 = vpop.f32.mrb[0].mxu0
    %1108 = vmatprep.mubr.bf16.mxu0 0
    %1109 = vmatmul.mubr.bf16.gmra.mrb[0].mxu0 %v1051
    %v1110 = vpop.f32.mrb[0].mxu0
    %v1111 = vadd.f32 0.0, %v1110
    %v1112 = vpop.f32.mrb[0].mxu0
    %v1113 = vpop.f32.mrb[0].mxu0
    %v1114 = vadd.f32 0.0, %v1113
    %v1115 = vpop.f32.mrb[0].mxu0
    %1116 = vdwg.mxu0
    %v1117 = vmul.f32 %v1087, 2.0
    %v1118 = vmul.f32 %v1090, 2.0
    %v1119 = vmul.f32 %v1095, 2.0
    %v1120 = vmul.f32 %v1098, 2.0
    %v1121 = vmul.f32 %v1103, 2.0
    %v1122 = vmul.f32 %v1106, 2.0
    %v1123 = vmul.f32 %v1111, 2.0
    %v1124 = vmul.f32 %v1114, 2.0
    %v1125 = vsub.f32 %v1117, %v955
    %v1126 = vsub.f32 %v1118, %v956
    %v1127 = vsub.f32 %v1119, %v957
    %v1128 = vsub.f32 %v1120, %v958
    %v1129 = vsub.f32 %v1121, %v959
    %v1130 = vsub.f32 %v1122, %v960
    %v1131 = vsub.f32 %v1123, %v961
    %v1132 = vsub.f32 %v1124, %v962
    %v1133 = vpack.c.bf16 %v1126, %v1125
    %v1134 = vpack.c.bf16 %v1128, %v1127
    %v1135 = vpack.c.bf16 %v1130, %v1129
    %v1136 = vpack.c.bf16 %v1132, %v1131
    %1137 = vmatprep.subr.bf16.mxu0 0
    %1138 = vmatpush1.bf16.msra.mxu0 %v194
    %1139 = vmatprep.subr.bf16.mxu0 0
    %1140 = vmatpush1.bf16.msra.mxu0 %v195
    %1141 = vmatprep.subr.bf16.mxu0 0
    %1142 = vmatpush1.bf16.msra.mxu0 %v196
    %1143 = vmatprep.subr.bf16.mxu0 0
    %1144 = vmatpush1.bf16.msra.mxu0 %v197
    %1145 = vmatprep.subr.bf16.mxu0 0
    %1146 = vmatpush1.bf16.msra.mxu0 %v198
    %1147 = vmatprep.subr.bf16.mxu0 0
    %1148 = vmatpush1.bf16.msra.mxu0 %v199
    %1149 = vmatprep.subr.bf16.mxu0 0
    %1150 = vmatpush1.bf16.msra.mxu0 %v200
    %1151 = vmatprep.subr.bf16.mxu0 0
    %1152 = vmatpush1.bf16.msra.mxu0 %v201
    %1153 = vmatprep.subr.bf16.mxu0 0
    %1154 = vmatpush1.bf16.msra.mxu0 0
    %1155 = vmatprep.subr.bf16.mxu0 0
    %1156 = vmatpush1.bf16.msra.mxu0 0
    %1157 = vmatprep.subr.bf16.mxu0 0
    %1158 = vmatpush1.bf16.msra.mxu0 0
    %1159 = vmatprep.subr.bf16.mxu0 0
    %1160 = vmatpush1.bf16.msra.mxu0 0
    %1161 = vmatprep.subr.bf16.mxu0 0
    %1162 = vmatpush1.bf16.msra.mxu0 0
    %1163 = vmatprep.subr.bf16.mxu0 0
    %1164 = vmatpush1.bf16.msra.mxu0 0
    %1165 = vmatprep.subr.bf16.mxu0 0
    %1166 = vmatpush1.bf16.msra.mxu0 0
    %1167 = vmatprep.subr.bf16.mxu0 0
    %1168 = vmatpush1.bf16.msra.mxu0 0
    %1169 = vmatprep.mubr.bf16.mxu0 0
    %1170 = vmatmul.mubr.bf16.gmra.mrb[0].mxu0 %v1133
    %v1171 = vpop.f32.mrb[0].mxu0
    %v1172 = vadd.f32 0.0, %v1171
    %v1173 = vpop.f32.mrb[0].mxu0
    %v1174 = vpop.f32.mrb[0].mxu0
    %v1175 = vadd.f32 0.0, %v1174
    %v1176 = vpop.f32.mrb[0].mxu0
    %1177 = vmatprep.mubr.bf16.mxu0 0
    %1178 = vmatmul.mubr.bf16.gmra.mrb[0].mxu0 %v1134
    %v1179 = vpop.f32.mrb[0].mxu0
    %v1180 = vadd.f32 0.0, %v1179
    %v1181 = vpop.f32.mrb[0].mxu0
    %v1182 = vpop.f32.mrb[0].mxu0
    %v1183 = vadd.f32 0.0, %v1182
    %v1184 = vpop.f32.mrb[0].mxu0
    %1185 = vmatprep.mubr.bf16.mxu0 0
    %1186 = vmatmul.mubr.bf16.gmra.mrb[0].mxu0 %v1135
    %v1187 = vpop.f32.mrb[0].mxu0
    %v1188 = vadd.f32 0.0, %v1187
    %v1189 = vpop.f32.mrb[0].mxu0
    %v1190 = vpop.f32.mrb[0].mxu0
    %v1191 = vadd.f32 0.0, %v1190
    %v1192 = vpop.f32.mrb[0].mxu0
    %1193 = vmatprep.mubr.bf16.mxu0 0
    %1194 = vmatmul.mubr.bf16.gmra.mrb[0].mxu0 %v1136
    %v1195 = vpop.f32.mrb[0].mxu0
    %v1196 = vadd.f32 0.0, %v1195
    %v1197 = vpop.f32.mrb[0].mxu0
    %v1198 = vpop.f32.mrb[0].mxu0
    %v1199 = vadd.f32 0.0, %v1198
    %v1200 = vpop.f32.mrb[0].mxu0
    %1201 = vdwg.mxu0
    %v1202 = vmul.f32 %v1172, 2.0
    %v1203 = vmul.f32 %v1175, 2.0
    %v1204 = vmul.f32 %v1180, 2.0
    %v1205 = vmul.f32 %v1183, 2.0
    %v1206 = vmul.f32 %v1188, 2.0
    %v1207 = vmul.f32 %v1191, 2.0
    %v1208 = vmul.f32 %v1196, 2.0
    %v1209 = vmul.f32 %v1199, 2.0
    %v1210 = vsub.f32 %v1202, %v1040
    %v1211 = vsub.f32 %v1203, %v1041
    %v1212 = vsub.f32 %v1204, %v1042
    %v1213 = vsub.f32 %v1205, %v1043
    %v1214 = vsub.f32 %v1206, %v1044
    %v1215 = vsub.f32 %v1207, %v1045
    %v1216 = vsub.f32 %v1208, %v1046
    %v1217 = vsub.f32 %v1209, %v1047
    %v1218 = vpack.c.bf16 %v1211, %v1210
    %v1219 = vpack.c.bf16 %v1213, %v1212
    %v1220 = vpack.c.bf16 %v1215, %v1214
    %v1221 = vpack.c.bf16 %v1217, %v1216
    %1222 = vmatprep.subr.bf16.mxu0 0
    %1223 = vmatpush1.bf16.msra.mxu0 %v194
    %1224 = vmatprep.subr.bf16.mxu0 0
    %1225 = vmatpush1.bf16.msra.mxu0 %v195
    %1226 = vmatprep.subr.bf16.mxu0 0
    %1227 = vmatpush1.bf16.msra.mxu0 %v196
    %1228 = vmatprep.subr.bf16.mxu0 0
    %1229 = vmatpush1.bf16.msra.mxu0 %v197
    %1230 = vmatprep.subr.bf16.mxu0 0
    %1231 = vmatpush1.bf16.msra.mxu0 %v198
    %1232 = vmatprep.subr.bf16.mxu0 0
    %1233 = vmatpush1.bf16.msra.mxu0 %v199
    %1234 = vmatprep.subr.bf16.mxu0 0
    %1235 = vmatpush1.bf16.msra.mxu0 %v200
    %1236 = vmatprep.subr.bf16.mxu0 0
    %1237 = vmatpush1.bf16.msra.mxu0 %v201
    %1238 = vmatprep.subr.bf16.mxu0 0
    %1239 = vmatpush1.bf16.msra.mxu0 0
    %1240 = vmatprep.subr.bf16.mxu0 0
    %1241 = vmatpush1.bf16.msra.mxu0 0
    %1242 = vmatprep.subr.bf16.mxu0 0
    %1243 = vmatpush1.bf16.msra.mxu0 0
    %1244 = vmatprep.subr.bf16.mxu0 0
    %1245 = vmatpush1.bf16.msra.mxu0 0
    %1246 = vmatprep.subr.bf16.mxu0 0
    %1247 = vmatpush1.bf16.msra.mxu0 0
    %1248 = vmatprep.subr.bf16.mxu0 0
    %1249 = vmatpush1.bf16.msra.mxu0 0
    %1250 = vmatprep.subr.bf16.mxu0 0
    %1251 = vmatpush1.bf16.msra.mxu0 0
    %1252 = vmatprep.subr.bf16.mxu0 0
    %1253 = vmatpush1.bf16.msra.mxu0 0
    %1254 = vmatprep.mubr.bf16.mxu0 0
    %1255 = vmatmul.mubr.bf16.gmra.mrb[0].mxu0 %v1218
    %v1256 = vpop.f32.mrb[0].mxu0
    %v1257 = vadd.f32 0.0, %v1256
    %v1258 = vpop.f32.mrb[0].mxu0
    %v1259 = vpop.f32.mrb[0].mxu0
    %v1260 = vadd.f32 0.0, %v1259
    %v1261 = vpop.f32.mrb[0].mxu0
    %1262 = vmatprep.mubr.bf16.mxu0 0
    %1263 = vmatmul.mubr.bf16.gmra.mrb[0].mxu0 %v1219
    %v1264 = vpop.f32.mrb[0].mxu0
    %v1265 = vadd.f32 0.0, %v1264
    %v1266 = vpop.f32.mrb[0].mxu0
    %v1267 = vpop.f32.mrb[0].mxu0
    %v1268 = vadd.f32 0.0, %v1267
    %v1269 = vpop.f32.mrb[0].mxu0
    %1270 = vmatprep.mubr.bf16.mxu0 0
    %1271 = vmatmul.mubr.bf16.gmra.mrb[0].mxu0 %v1220
    %v1272 = vpop.f32.mrb[0].mxu0
    %v1273 = vadd.f32 0.0, %v1272
    %v1274 = vpop.f32.mrb[0].mxu0
    %v1275 = vpop.f32.mrb[0].mxu0
    %v1276 = vadd.f32 0.0, %v1275
    %v1277 = vpop.f32.mrb[0].mxu0
    %1278 = vmatprep.mubr.bf16.mxu0 0
    %1279 = vmatmul.mubr.bf16.gmra.mrb[0].mxu0 %v1221
    %v1280 = vpop.f32.mrb[0].mxu0
    %v1281 = vadd.f32 0.0, %v1280
    %v1282 = vpop.f32.mrb[0].mxu0
    %v1283 = vpop.f32.mrb[0].mxu0
    %v1284 = vadd.f32 0.0, %v1283
    %v1285 = vpop.f32.mrb[0].mxu0
    %1286 = vdwg.mxu0
    %v1287 = vmul.f32 %v1257, 2.0
    %v1288 = vmul.f32 %v1260, 2.0
    %v1289 = vmul.f32 %v1265, 2.0
    %v1290 = vmul.f32 %v1268, 2.0
    %v1291 = vmul.f32 %v1273, 2.0
    %v1292 = vmul.f32 %v1276, 2.0
    %v1293 = vmul.f32 %v1281, 2.0
    %v1294 = vmul.f32 %v1284, 2.0
    %v1295 = vsub.f32 %v1287, %v1125
    %v1296 = vsub.f32 %v1288, %v1126
    %v1297 = vsub.f32 %v1289, %v1127
    %v1298 = vsub.f32 %v1290, %v1128
    %v1299 = vsub.f32 %v1291, %v1129
    %v1300 = vsub.f32 %v1292, %v1130
    %v1301 = vsub.f32 %v1293, %v1131
    %v1302 = vsub.f32 %v1294, %v1132
    %v1303 = vpack.c.bf16 %v1296, %v1295
    %v1304 = vpack.c.bf16 %v1298, %v1297
    %v1305 = vpack.c.bf16 %v1300, %v1299
    %v1306 = vpack.c.bf16 %v1302, %v1301
    %1307 = vmatprep.subr.bf16.mxu0 0
    %1308 = vmatpush1.bf16.msra.mxu0 %v194
    %1309 = vmatprep.subr.bf16.mxu0 0
    %1310 = vmatpush1.bf16.msra.mxu0 %v195
    %1311 = vmatprep.subr.bf16.mxu0 0
    %1312 = vmatpush1.bf16.msra.mxu0 %v196
    %1313 = vmatprep.subr.bf16.mxu0 0
    %1314 = vmatpush1.bf16.msra.mxu0 %v197
    %1315 = vmatprep.subr.bf16.mxu0 0
    %1316 = vmatpush1.bf16.msra.mxu0 %v198
    %1317 = vmatprep.subr.bf16.mxu0 0
    %1318 = vmatpush1.bf16.msra.mxu0 %v199
    %1319 = vmatprep.subr.bf16.mxu0 0
    %1320 = vmatpush1.bf16.msra.mxu0 %v200
    %1321 = vmatprep.subr.bf16.mxu0 0
    %1322 = vmatpush1.bf16.msra.mxu0 %v201
    %1323 = vmatprep.subr.bf16.mxu0 0
    %1324 = vmatpush1.bf16.msra.mxu0 0
    %1325 = vmatprep.subr.bf16.mxu0 0
    %1326 = vmatpush1.bf16.msra.mxu0 0
    %1327 = vmatprep.subr.bf16.mxu0 0
    %1328 = vmatpush1.bf16.msra.mxu0 0
    %1329 = vmatprep.subr.bf16.mxu0 0
    %1330 = vmatpush1.bf16.msra.mxu0 0
    %1331 = vmatprep.subr.bf16.mxu0 0
    %1332 = vmatpush1.bf16.msra.mxu0 0
    %1333 = vmatprep.subr.bf16.mxu0 0
    %1334 = vmatpush1.bf16.msra.mxu0 0
    %1335 = vmatprep.subr.bf16.mxu0 0
    %1336 = vmatpush1.bf16.msra.mxu0 0
    %1337 = vmatprep.subr.bf16.mxu0 0
    %1338 = vmatpush1.bf16.msra.mxu0 0
    %1339 = vmatprep.mubr.bf16.mxu0 0
    %1340 = vmatmul.mubr.bf16.gmra.mrb[0].mxu0 %v1303
    %v1341 = vpop.f32.mrb[0].mxu0
    %v1342 = vadd.f32 0.0, %v1341
    %v1343 = vpop.f32.mrb[0].mxu0
    %v1344 = vpop.f32.mrb[0].mxu0
    %v1345 = vadd.f32 0.0, %v1344
    %v1346 = vpop.f32.mrb[0].mxu0
    %1347 = vmatprep.mubr.bf16.mxu0 0
    %1348 = vmatmul.mubr.bf16.gmra.mrb[0].mxu0 %v1304
    %v1349 = vpop.f32.mrb[0].mxu0
    %v1350 = vadd.f32 0.0, %v1349
    %v1351 = vpop.f32.mrb[0].mxu0
    %v1352 = vpop.f32.mrb[0].mxu0
    %v1353 = vadd.f32 0.0, %v1352
    %v1354 = vpop.f32.mrb[0].mxu0
    %1355 = vmatprep.mubr.bf16.mxu0 0
    %1356 = vmatmul.mubr.bf16.gmra.mrb[0].mxu0 %v1305
    %v1357 = vpop.f32.mrb[0].mxu0
    %v1358 = vadd.f32 0.0, %v1357
    %v1359 = vpop.f32.mrb[0].mxu0
    %v1360 = vpop.f32.mrb[0].mxu0
    %v1361 = vadd.f32 0.0, %v1360
    %v1362 = vpop.f32.mrb[0].mxu0
    %1363 = vmatprep.mubr.bf16.mxu0 0
    %1364 = vmatmul.mubr.bf16.gmra.mrb[0].mxu0 %v1306
    %v1365 = vpop.f32.mrb[0].mxu0
    %v1366 = vadd.f32 0.0, %v1365
    %v1367 = vpop.f32.mrb[0].mxu0
    %v1368 = vpop.f32.mrb[0].mxu0
    %v1369 = vadd.f32 0.0, %v1368
    %v1370 = vpop.f32.mrb[0].mxu0
    %1371 = vdwg.mxu0
    %v1372 = vmul.f32 %v1342, 2.0
    %v1373 = vmul.f32 %v1345, 2.0
    %v1374 = vmul.f32 %v1350, 2.0
    %v1375 = vmul.f32 %v1353, 2.0
    %v1376 = vmul.f32 %v1358, 2.0
    %v1377 = vmul.f32 %v1361, 2.0
    %v1378 = vmul.f32 %v1366, 2.0
    %v1379 = vmul.f32 %v1369, 2.0
    %v1380 = vsub.f32 %v1372, %v1210
    %v1381 = vsub.f32 %v1373, %v1211
    %v1382 = vsub.f32 %v1374, %v1212
    %v1383 = vsub.f32 %v1375, %v1213
    %v1384 = vsub.f32 %v1376, %v1214
    %v1385 = vsub.f32 %v1377, %v1215
    %v1386 = vsub.f32 %v1378, %v1216
    %v1387 = vsub.f32 %v1379, %v1217
    %v1388 = vpack.c.bf16 %v1381, %v1380
    %v1389 = vpack.c.bf16 %v1383, %v1382
    %v1390 = vpack.c.bf16 %v1385, %v1384
    %v1391 = vpack.c.bf16 %v1387, %v1386
    %v1392 = vld [vmem:[#allocation10] sm:$0xff]
    %v1393 = vld [vmem:[#allocation10 + $0x8] sm:$0xff]
    %v1394 = vld [vmem:[#allocation10 + $0x10] sm:$0xff]
    %v1395 = vld [vmem:[#allocation10 + $0x18] sm:$0xff]
    %v1396 = vld [vmem:[#allocation10 + $0x20] sm:$0xff]
    %v1397 = vld [vmem:[#allocation10 + $0x28] sm:$0xff]
    %v1398 = vld [vmem:[#allocation10 + $0x30] sm:$0xff]
    %v1399 = vld [vmem:[#allocation10 + $0x38] sm:$0xff]
    %v1400 = vld [vmem:[#allocation10 + $0x40] sm:$0xff]
    %v1401 = vld [vmem:[#allocation10 + $0x48] sm:$0xff]
    %v1402 = vld [vmem:[#allocation10 + $0x50] sm:$0xff]
    %v1403 = vld [vmem:[#allocation10 + $0x58] sm:$0xff]
    %v1404 = vld [vmem:[#allocation10 + $0x60] sm:$0xff]
    %v1405 = vld [vmem:[#allocation10 + $0x68] sm:$0xff]
    %v1406 = vld [vmem:[#allocation10 + $0x70] sm:$0xff]
    %v1407 = vld [vmem:[#allocation10 + $0x78] sm:$0xff]
    %v1408 = vld [vmem:[#allocation11] sm:$0xff]
    %v1409 = vld [vmem:[#allocation11 + $0x8] sm:$0xff]
    %v1410 = vld [vmem:[#allocation11 + $0x10] sm:$0xff]
    %v1411 = vld [vmem:[#allocation11 + $0x18] sm:$0xff]
    %v1412 = vld [vmem:[#allocation11 + $0x20] sm:$0xff]
    %v1413 = vld [vmem:[#allocation11 + $0x28] sm:$0xff]
    %v1414 = vld [vmem:[#allocation11 + $0x30] sm:$0xff]
    %v1415 = vld [vmem:[#allocation11 + $0x38] sm:$0xff]
    %1417 = vset.pattern.permute.xlu0 0
    %1418 = vperm.xlu0 %1417, %v1408
    %v1419 = vpop.permute.xlu0 %1418
    %1422 = vset.pattern.permute.xlu0 0
    %1423 = vperm.xlu0 %1422, %v1409
    %v1424 = vpop.permute.xlu0 %1423
    %1427 = vset.pattern.permute.xlu0 0
    %1428 = vperm.xlu0 %1427, %v1410
    %v1429 = vpop.permute.xlu0 %1428
    %1432 = vset.pattern.permute.xlu0 0
    %1433 = vperm.xlu0 %1432, %v1411
    %v1434 = vpop.permute.xlu0 %1433
    %1437 = vset.pattern.permute.xlu0 0
    %1438 = vperm.xlu0 %1437, %v1412
    %v1439 = vpop.permute.xlu0 %1438
    %1442 = vset.pattern.permute.xlu0 0
    %1443 = vperm.xlu0 %1442, %v1413
    %v1444 = vpop.permute.xlu0 %1443
    %1447 = vset.pattern.permute.xlu0 0
    %1448 = vperm.xlu0 %1447, %v1414
    %v1449 = vpop.permute.xlu0 %1448
    %1452 = vset.pattern.permute.xlu0 0
    %1453 = vperm.xlu0 %1452, %v1415
    %v1454 = vpop.permute.xlu0 %1453
    %v1472 = vunpack.c.l.b16 %v1392
    %v1473 = vunpack.c.h.b16 %v1392
    %v1474 = vunpack.c.l.b16 %v1393
    %v1475 = vunpack.c.h.b16 %v1393
    %v1476 = vunpack.c.l.b16 %v1394
    %v1477 = vunpack.c.h.b16 %v1394
    %v1478 = vunpack.c.l.b16 %v1395
    %v1479 = vunpack.c.h.b16 %v1395
    %v1480 = vunpack.c.l.b16 %v1396
    %v1481 = vunpack.c.h.b16 %v1396
    %v1482 = vunpack.c.l.b16 %v1397
    %v1483 = vunpack.c.h.b16 %v1397
    %v1484 = vunpack.c.l.b16 %v1398
    %v1485 = vunpack.c.h.b16 %v1398
    %v1486 = vunpack.c.l.b16 %v1399
    %v1487 = vunpack.c.h.b16 %v1399
    %v1488 = vunpack.c.l.b16 %v1400
    %v1489 = vunpack.c.h.b16 %v1400
    %v1490 = vunpack.c.l.b16 %v1401
    %v1491 = vunpack.c.h.b16 %v1401
    %v1492 = vunpack.c.l.b16 %v1402
    %v1493 = vunpack.c.h.b16 %v1402
    %v1494 = vunpack.c.l.b16 %v1403
    %v1495 = vunpack.c.h.b16 %v1403
    %v1496 = vunpack.c.l.b16 %v1404
    %v1497 = vunpack.c.h.b16 %v1404
    %v1498 = vunpack.c.l.b16 %v1405
    %v1499 = vunpack.c.h.b16 %v1405
    %v1500 = vunpack.c.l.b16 %v1406
    %v1501 = vunpack.c.h.b16 %v1406
    %v1502 = vunpack.c.l.b16 %v1407
    %v1503 = vunpack.c.h.b16 %v1407
    %v1504 = vpack.c.b16 %v1476, %v1472
    %v1505 = vpack.c.b16 %v1477, %v1473
    %v1506 = vpack.c.b16 %v1478, %v1474
    %v1507 = vpack.c.b16 %v1479, %v1475
    %v1508 = vpack.c.b16 %v1484, %v1480
    %v1509 = vpack.c.b16 %v1485, %v1481
    %v1510 = vpack.c.b16 %v1486, %v1482
    %v1511 = vpack.c.b16 %v1487, %v1483
    %v1512 = vpack.c.b16 %v1492, %v1488
    %v1513 = vpack.c.b16 %v1493, %v1489
    %v1514 = vpack.c.b16 %v1494, %v1490
    %v1515 = vpack.c.b16 %v1495, %v1491
    %v1516 = vpack.c.b16 %v1500, %v1496
    %v1517 = vpack.c.b16 %v1501, %v1497
    %v1518 = vpack.c.b16 %v1502, %v1498
    %v1519 = vpack.c.b16 %v1503, %v1499
    %1536 = vmatprep.subr.bf16.mxu0 0
    %1537 = vmatpush1.bf16.msra.mxu0 %v801
    %1538 = vmatprep.subr.bf16.mxu0 0
    %1539 = vmatpush1.bf16.msra.mxu0 %v802
    %1540 = vmatprep.subr.bf16.mxu0 0
    %1541 = vmatpush1.bf16.msra.mxu0 %v803
    %1542 = vmatprep.subr.bf16.mxu0 0
    %1543 = vmatpush1.bf16.msra.mxu0 %v804
    %1544 = vmatprep.subr.bf16.mxu0 0
    %1545 = vmatpush1.bf16.msra.mxu0 %v878
    %1546 = vmatprep.subr.bf16.mxu0 0
    %1547 = vmatpush1.bf16.msra.mxu0 %v879
    %1548 = vmatprep.subr.bf16.mxu0 0
    %1549 = vmatpush1.bf16.msra.mxu0 %v880
    %1550 = vmatprep.subr.bf16.mxu0 0
    %1551 = vmatpush1.bf16.msra.mxu0 %v881
    %1552 = vmatprep.subr.bf16.mxu0 0
    %1553 = vmatpush1.bf16.msra.mxu0 %v963
    %1554 = vmatprep.subr.bf16.mxu0 0
    %1555 = vmatpush1.bf16.msra.mxu0 %v964
    %1556 = vmatprep.subr.bf16.mxu0 0
    %1557 = vmatpush1.bf16.msra.mxu0 %v965
    %1558 = vmatprep.subr.bf16.mxu0 0
    %1559 = vmatpush1.bf16.msra.mxu0 %v966
    %1560 = vmatprep.subr.bf16.mxu0 0
    %1561 = vmatpush1.bf16.msra.mxu0 %v1048
    %1562 = vmatprep.subr.bf16.mxu0 0
    %1563 = vmatpush1.bf16.msra.mxu0 %v1049
    %1564 = vmatprep.subr.bf16.mxu0 0
    %1565 = vmatpush1.bf16.msra.mxu0 %v1050
    %1566 = vmatprep.subr.bf16.mxu0 0
    %1567 = vmatpush1.bf16.msra.mxu0 %v1051
    %1568 = vmatprep.mubr.bf16.mxu0 %v1505
    %1569 = vmatmul.mubr.bf16.gmra.mrb[0].mxu0 %v1504
    %v1570 = vpop.f32.mrb[0].mxu0
    %v1571 = vadd.f32 %v1419, %v1570
    %v1572 = vpop.f32.mrb[0].mxu0
    %v1573 = vpop.f32.mrb[0].mxu0
    %v1574 = vadd.f32 %v1424, %v1573
    %v1575 = vpop.f32.mrb[0].mxu0
    %1576 = vmatprep.mubr.bf16.mxu0 %v1509
    %1577 = vmatmul.mubr.bf16.gmra.mrb[0].mxu0 %v1508
    %v1578 = vpop.f32.mrb[0].mxu0
    %v1579 = vadd.f32 %v1429, %v1578
    %v1580 = vpop.f32.mrb[0].mxu0
    %v1581 = vpop.f32.mrb[0].mxu0
    %v1582 = vadd.f32 %v1434, %v1581
    %v1583 = vpop.f32.mrb[0].mxu0
    %1584 = vmatprep.mubr.bf16.mxu0 %v1513
    %1585 = vmatmul.mubr.bf16.gmra.mrb[0].mxu0 %v1512
    %v1586 = vpop.f32.mrb[0].mxu0
    %v1587 = vadd.f32 %v1439, %v1586
    %v1588 = vpop.f32.mrb[0].mxu0
    %v1589 = vpop.f32.mrb[0].mxu0
    %v1590 = vadd.f32 %v1444, %v1589
    %v1591 = vpop.f32.mrb[0].mxu0
    %1592 = vmatprep.mubr.bf16.mxu0 %v1517
    %1593 = vmatmul.mubr.bf16.gmra.mrb[0].mxu0 %v1516
    %v1594 = vpop.f32.mrb[0].mxu0
    %v1595 = vadd.f32 %v1449, %v1594
    %v1596 = vpop.f32.mrb[0].mxu0
    %v1597 = vpop.f32.mrb[0].mxu0
    %v1598 = vadd.f32 %v1454, %v1597
    %v1599 = vpop.f32.mrb[0].mxu0
    %1600 = vdwg.mxu0
    %1601 = vmatprep.subr.bf16.mxu0 0
    %1602 = vmatpush1.bf16.msra.mxu0 %v1133
    %1603 = vmatprep.subr.bf16.mxu0 0
    %1604 = vmatpush1.bf16.msra.mxu0 %v1134
    %1605 = vmatprep.subr.bf16.mxu0 0
    %1606 = vmatpush1.bf16.msra.mxu0 %v1135
    %1607 = vmatprep.subr.bf16.mxu0 0
    %1608 = vmatpush1.bf16.msra.mxu0 %v1136
    %1609 = vmatprep.subr.bf16.mxu0 0
    %1610 = vmatpush1.bf16.msra.mxu0 %v1218
    %1611 = vmatprep.subr.bf16.mxu0 0
    %1612 = vmatpush1.bf16.msra.mxu0 %v1219
    %1613 = vmatprep.subr.bf16.mxu0 0
    %1614 = vmatpush1.bf16.msra.mxu0 %v1220
    %1615 = vmatprep.subr.bf16.mxu0 0
    %1616 = vmatpush1.bf16.msra.mxu0 %v1221
    %1617 = vmatprep.subr.bf16.mxu0 0
    %1618 = vmatpush1.bf16.msra.mxu0 %v1303
    %1619 = vmatprep.subr.bf16.mxu0 0
    %1620 = vmatpush1.bf16.msra.mxu0 %v1304
    %1621 = vmatprep.subr.bf16.mxu0 0
    %1622 = vmatpush1.bf16.msra.mxu0 %v1305
    %1623 = vmatprep.subr.bf16.mxu0 0
    %1624 = vmatpush1.bf16.msra.mxu0 %v1306
    %1625 = vmatprep.subr.bf16.mxu0 0
    %1626 = vmatpush1.bf16.msra.mxu0 %v1388
    %1627 = vmatprep.subr.bf16.mxu0 0
    %1628 = vmatpush1.bf16.msra.mxu0 %v1389
    %1629 = vmatprep.subr.bf16.mxu0 0
    %1630 = vmatpush1.bf16.msra.mxu0 %v1390
    %1631 = vmatprep.subr.bf16.mxu0 0
    %1632 = vmatpush1.bf16.msra.mxu0 %v1391
    %1633 = vmatprep.mubr.bf16.mxu0 %v1507
    %1634 = vmatmul.mubr.bf16.gmra.mrb[0].mxu0 %v1506
    %v1635 = vpop.f32.mrb[0].mxu0
    %v1636 = vadd.f32 %v1571, %v1635
    %v1637 = vpop.f32.mrb[0].mxu0
    %v1638 = vpop.f32.mrb[0].mxu0
    %v1639 = vadd.f32 %v1574, %v1638
    %v1640 = vpop.f32.mrb[0].mxu0
    %1641 = vmatprep.mubr.bf16.mxu0 %v1511
    %1642 = vmatmul.mubr.bf16.gmra.mrb[0].mxu0 %v1510
    %v1643 = vpop.f32.mrb[0].mxu0
    %v1644 = vadd.f32 %v1579, %v1643
    %v1645 = vpop.f32.mrb[0].mxu0
    %v1646 = vpop.f32.mrb[0].mxu0
    %v1647 = vadd.f32 %v1582, %v1646
    %v1648 = vpop.f32.mrb[0].mxu0
    %1649 = vmatprep.mubr.bf16.mxu0 %v1515
    %1650 = vmatmul.mubr.bf16.gmra.mrb[0].mxu0 %v1514
    %v1651 = vpop.f32.mrb[0].mxu0
    %v1652 = vadd.f32 %v1587, %v1651
    %v1653 = vpop.f32.mrb[0].mxu0
    %v1654 = vpop.f32.mrb[0].mxu0
    %v1655 = vadd.f32 %v1590, %v1654
    %v1656 = vpop.f32.mrb[0].mxu0
    %1657 = vmatprep.mubr.bf16.mxu0 %v1519
    %1658 = vmatmul.mubr.bf16.gmra.mrb[0].mxu0 %v1518
    %v1659 = vpop.f32.mrb[0].mxu0
    %v1660 = vadd.f32 %v1595, %v1659
    %v1661 = vpop.f32.mrb[0].mxu0
    %v1662 = vpop.f32.mrb[0].mxu0
    %v1663 = vadd.f32 %v1598, %v1662
    %v1664 = vpop.f32.mrb[0].mxu0
    %1665 = vdwg.mxu0
    %v1666 = vmax.f32 %v1636, 0.0
    %v1667 = vmax.f32 %v1639, 0.0
    %v1668 = vmax.f32 %v1644, 0.0
    %v1669 = vmax.f32 %v1647, 0.0
    %v1670 = vadd.f32 %v1666, %v1652
    %v1671 = vadd.f32 %v1667, %v1655
    %v1672 = vadd.f32 %v1668, %v1660
    %v1673 = vadd.f32 %v1669, %v1663
    %v1674 = vpack.c.bf16 %v1671, %v1670
    %v1675 = vpack.c.bf16 %v1673, %v1672
    %1676 = vmatprep.subr.bf16.mxu0 0
    %1677 = vmatpush1.bf16.msra.mxu0 %v194
    %1678 = vmatprep.subr.bf16.mxu0 0
    %1679 = vmatpush1.bf16.msra.mxu0 %v195
    %1680 = vmatprep.subr.bf16.mxu0 0
    %1681 = vmatpush1.bf16.msra.mxu0 %v196
    %1682 = vmatprep.subr.bf16.mxu0 0
    %1683 = vmatpush1.bf16.msra.mxu0 %v197
    %1684 = vmatprep.subr.bf16.mxu0 0
    %1685 = vmatpush1.bf16.msra.mxu0 %v198
    %1686 = vmatprep.subr.bf16.mxu0 0
    %1687 = vmatpush1.bf16.msra.mxu0 %v199
    %1688 = vmatprep.subr.bf16.mxu0 0
    %1689 = vmatpush1.bf16.msra.mxu0 %v200
    %1690 = vmatprep.subr.bf16.mxu0 0
    %1691 = vmatpush1.bf16.msra.mxu0 %v201
    %1692 = vmatprep.subr.bf16.mxu0 0
    %1693 = vmatpush1.bf16.msra.mxu0 0
    %1694 = vmatprep.subr.bf16.mxu0 0
    %1695 = vmatpush1.bf16.msra.mxu0 0
    %1696 = vmatprep.subr.bf16.mxu0 0
    %1697 = vmatpush1.bf16.msra.mxu0 0
    %1698 = vmatprep.subr.bf16.mxu0 0
    %1699 = vmatpush1.bf16.msra.mxu0 0
    %1700 = vmatprep.subr.bf16.mxu0 0
    %1701 = vmatpush1.bf16.msra.mxu0 0
    %1702 = vmatprep.subr.bf16.mxu0 0
    %1703 = vmatpush1.bf16.msra.mxu0 0
    %1704 = vmatprep.subr.bf16.mxu0 0
    %1705 = vmatpush1.bf16.msra.mxu0 0
    %1706 = vmatprep.subr.bf16.mxu0 0
    %1707 = vmatpush1.bf16.msra.mxu0 0
    %1708 = vmatprep.mubr.bf16.mxu0 0
    %1709 = vmatmul.mubr.bf16.gmra.mrb[0].mxu0 %v1674
    %v1710 = vpop.f32.mrb[0].mxu0
    %v1711 = vadd.f32 0.0, %v1710
    %v1712 = vpop.f32.mrb[0].mxu0
    %v1713 = vpop.f32.mrb[0].mxu0
    %v1714 = vadd.f32 0.0, %v1713
    %v1715 = vpop.f32.mrb[0].mxu0
    %1716 = vmatprep.mubr.bf16.mxu0 0
    %1717 = vmatmul.mubr.bf16.gmra.mrb[0].mxu0 %v1675
    %v1718 = vpop.f32.mrb[0].mxu0
    %v1719 = vadd.f32 0.0, %v1718
    %v1720 = vpop.f32.mrb[0].mxu0
    %v1721 = vpop.f32.mrb[0].mxu0
    %v1722 = vadd.f32 0.0, %v1721
    %v1723 = vpop.f32.mrb[0].mxu0
    %1724 = vdwg.mxu0
    %v1725 = vpack.c.bf16 %v1714, %v1711
    %v1726 = vpack.c.bf16 %v1722, %v1719
    %v1727 = vld [vmem:[#allocation13] sm:$0xf]
    %v1728 = vld [vmem:[#allocation14] sm:$0xff]
    %1730 = vset.pattern.permute.xlu0 0
    %1731 = vperm.xlu0 %1730, %v1728
    %v1732 = vpop.permute.xlu0 %1731
    %vm1734 = vcmask 785408
    %v1736 = vsel %vm1734, %v1727, 0
    %1738 = vmatprep.subr.bf16.mxu0 0
    %1739 = vmatpush1.bf16.msra.mxu0 %v1674
    %1740 = vmatprep.subr.bf16.mxu0 0
    %1741 = vmatpush1.bf16.msra.mxu0 %v1675
    %1742 = vmatprep.subr.bf16.mxu0 0
    %1743 = vmatpush1.bf16.msra.mxu0 %v160
    %1744 = vmatprep.subr.bf16.mxu0 0
    %1745 = vmatpush1.bf16.msra.mxu0 %v1725
    %1746 = vmatprep.subr.bf16.mxu0 0
    %1747 = vmatpush1.bf16.msra.mxu0 %v1726
    %1748 = vmatprep.subr.bf16.mxu0 0
    %1749 = vmatpush1.bf16.msra.mxu0 %v251
    %1750 = vmatprep.subr.bf16.mxu0 0
    %1751 = vmatpush1.bf16.msra.mxu0 0
    %1752 = vmatprep.subr.bf16.mxu0 0
    %1753 = vmatpush1.bf16.msra.mxu0 0
    %1754 = vmatprep.subr.bf16.mxu0 0
    %1755 = vmatpush1.bf16.msra.mxu0 0
    %1756 = vmatprep.subr.bf16.mxu0 0
    %1757 = vmatpush1.bf16.msra.mxu0 0
    %1758 = vmatprep.subr.bf16.mxu0 0
    %1759 = vmatpush1.bf16.msra.mxu0 0
    %1760 = vmatprep.subr.bf16.mxu0 0
    %1761 = vmatpush1.bf16.msra.mxu0 0
    %1762 = vmatprep.subr.bf16.mxu0 0
    %1763 = vmatpush1.bf16.msra.mxu0 0
    %1764 = vmatprep.subr.bf16.mxu0 0
    %1765 = vmatpush1.bf16.msra.mxu0 0
    %1766 = vmatprep.subr.bf16.mxu0 0
    %1767 = vmatpush1.bf16.msra.mxu0 0
    %1768 = vmatprep.subr.bf16.mxu0 0
    %1769 = vmatpush1.bf16.msra.mxu0 0
    %1770 = vmatprep.mubr.bf16.mxu0 0
    %1771 = vmatmul.mubr.bf16.gmra.mrb[0].mxu0 %v1736
    %v1772 = vpop.f32.mrb[0].mxu0
    %v1773 = vadd.f32 %v1732, %v1772
    %v1774 = vpop.f32.mrb[0].mxu0
    %v1775 = vpop.f32.mrb[0].mxu0
    %v1776 = vpop.f32.mrb[0].mxu0
    %1777 = vdwg.mxu0
    %1778 = vst [vmem:[#allocation16] sm:$0xff] %v1773
    // Predicated region
    $region66: #{tpu_custom_call.1} parent=1 // pred_check
      _
    $region67: #{tpu_custom_call.1} parent=1 // pred_check_branch
      %1780 = sbr.rel (0) target = $region69
    $region68: #{tpu_custom_call.1} parent=1 // pred_region
      %s1782 = ssub.s32 128, 128
      %1783 = vsyncadd [#allocation4], %s1782
      %s1785 = sshll.u32 [#allocation16], 4
      %s1786 = int_to_ptr.vmem [resolvable:$true] %s1785
      %1788 = dma.vmem_to_hbm [thread:$0]  %s1786, 128, %s8, [#allocation4]
    $region69: #{tpu_custom_call.1} parent=1 // pred_fallthru
      _
    // Predicated region
    $region70: #{tpu_custom_call.1} parent=1 // pred_check
      _
    $region71: #{tpu_custom_call.1} parent=1 // pred_check_branch
      %1790 = sbr.rel (0) target = $region73
    $region72: #{tpu_custom_call.1} parent=1 // pred_region
      %1791 = dma.done [#allocation4], 128
    $region73: #{tpu_custom_call.1} parent=1 // pred_fallthru
      _
    %1792 = vsyncpa [#allocation3], 1
    %1793 = vsyncpa [#allocation6], 1
    %1794 = vsyncpa [#allocation9], 1
    %1795 = vsyncpa [#allocation12], 1
    %1796 = vsyncpa [#allocation15], 1
    %1797 = vsyncpa [#allocation4], 1

</llo_original>
